<compile_context>
chip_gen: v5e
topology: v5e:2x2
jax: 0.10.0
libtpu: 0.0.40
codegen_flags: <defaults>
</compile_context>

<pallas_src>
import functools
import math

import jax
import jax.numpy as jnp
from jax.experimental import pallas as pl
from jax.experimental.pallas import tpu as pltpu

POOL_K = 31          # avg_pool2d kernel size
POOL_HALF = 15       # avg_pool2d padding
_N_MAPS = 4          # map_5, map_4, map_3, map_2


def _tsa_stats_kernel(square, block_b, gt_ref, p5_ref, p4_ref, p3_ref, p2_ref,
                      ah_ref, *rest):
    """Per-sample reductions for ALL four lateral maps in one grid step.

    gt_ref  : (Bt, H, W)     bf16  target block (0/1)
    pX_ref  : (Bt, 1, H, W)  f32   logits blocks (map_5, map_4, map_3, map_2)
    ah_ref  : (H, H)         bf16  band matrix (1 iff |i-j| <= 15)
    aw_ref  : (W, W)         bf16  band matrix (only when H != W)
    out_ref : (Bt, 8, 128)   f32   lane-dense stats tile per sample;
              stat s of map m lives at [bt, s, m]:
                s=0 sum(BCE-with-logits)  s=1 sum(sig*t*weit)  s=2 sum((sig+t)*weit)
    """
    if square:
        (out_ref,) = rest
        aw_ref = ah_ref          # reuse the single band matrix when H == W
    else:
        aw_ref, out_ref = rest
    pred_refs = (p5_ref, p4_ref, p3_ref, p2_ref)

    sub = jax.lax.broadcasted_iota(jnp.int32, (8, 128), 0)
    lane = jax.lax.broadcasted_iota(jnp.int32, (8, 128), 1)
    zero = jnp.zeros((8, 128), jnp.float32)
    inv_k2 = 1.0 / float(POOL_K * POOL_K)

    for bt in range(block_b):                       # static unroll over samples
        t_bf = gt_ref[bt]                           # (H, W) bf16, values 0/1
        t = t_bf.astype(jnp.float32)

        # 31x31 box average, zero padding, count_include_pad=True:
        #   pooled = Ah @ t @ Aw / 31^2
        # Two bf16 MXU matmuls with f32 accumulation; exact because t, Ah, Aw
        # are 0/1 and the intermediate row sums are integers <= 31 (bf16-exact).
        tw = jnp.dot(t_bf, aw_ref[...], preferred_element_type=jnp.float32)
        pooled = jnp.dot(ah_ref[...], tw.astype(jnp.bfloat16),
                         preferred_element_type=jnp.float32)
        pooled = pooled * inv_k2

        weit = 1.0 + 5.0 * jnp.abs(pooled - t)      # gt-only: computed once
        tweit = t * weit
        sum_tweit = jnp.sum(tweit, keepdims=True)   # (1, 1), shared by all maps

        tile = zero
        for m, p_ref in enumerate(pred_refs):
            p = p_ref[bt, 0]                        # (H, W) f32 logits
            # Shared transcendental: one exp(-|p|) feeds both the stable BCE
            # log term and the (exact) sigmoid.
            e = jnp.exp(-jnp.abs(p))                # in (0, 1]
            inv = 1.0 / (1.0 + e)                   # exact sigmoid (no approx)
            sig = jnp.where(p >= 0.0, inv, e * inv)
            one_plus_e = 1.0 + e
            # log1p-equivalent without relying on a log1p lowering: when 1+e
            # rounds to 1 (huge |p|), log(1+e) would return 0; use e instead.
            log_term = jnp.where(one_plus_e > 1.0, jnp.log(one_plus_e), e)
            bce = jnp.maximum(p, 0.0) - p * t + log_term

            bce_s = jnp.sum(bce, keepdims=True)                  # (1, 1)
            inter_s = jnp.sum(sig * tweit, keepdims=True)        # sum(sig*t*weit)
            union_s = jnp.sum(sig * weit, keepdims=True) + sum_tweit

            lane_m = lane == m
            tile = (tile
                    + jnp.where(lane_m & (sub == 0), bce_s, zero)
                    + jnp.where(lane_m & (sub == 1), inter_s, zero)
                    + jnp.where(lane_m & (sub == 2), union_s, zero))

        out_ref[bt] = tile                          # one unmasked (8,128) store


def _tsa_stats_call(gt_bf, p5, p4, p3, p2, ah, aw, block_b):
    """gt_bf: (B,H,W) bf16; pX: (B,1,H,W) f32; ah/(aw): bf16 band matrices."""
    B, H, W = gt_bf.shape
    square = aw is None
    kernel = functools.partial(_tsa_stats_kernel, square, block_b)

    pred_spec = pl.BlockSpec((block_b, 1, H, W), lambda b: (b, 0, 0, 0))
    in_specs = [
        pl.BlockSpec((block_b, H, W), lambda b: (b, 0, 0)),     # gt (bf16)
        pred_spec, pred_spec, pred_spec, pred_spec,             # 4 pred maps
        pl.BlockSpec((H, H), lambda b: (0, 0)),                 # Ah (constant)
    ]
    args = [gt_bf, p5, p4, p3, p2, ah]
    if not square:
        in_specs.append(pl.BlockSpec((W, W), lambda b: (0, 0)))  # Aw (constant)
        args.append(aw)

    return pl.pallas_call(
        kernel,
        out_shape=jax.ShapeDtypeStruct((B, 8, 128), jnp.float32),
        grid=(B // block_b,),
        in_specs=in_specs,
        out_specs=pl.BlockSpec((block_b, 8, 128), lambda b: (b, 0, 0)),
        compiler_params=pltpu.CompilerParams(
            dimension_semantics=("parallel",),   # sample axis -> megacore split
            vmem_limit_bytes=48 * 1024 * 1024,   # > v5e's 16 MiB default,
                                                 # < v7x's 64 MiB physical
        ),
    )(*args)


def _choose_block_b(batch, h, w):
    """Samples per grid step: largest divisor of B under a ~24 MiB VMEM budget
    (double-buffered inputs + elementwise temps), keeping >=2 grid steps when
    possible so both v7x TensorCores get work."""
    budget = 24 * 1024 * 1024
    per_sample = 2 * (4 * 4 + 2) * h * w            # dbl-buffered 4xf32 preds + bf16 gt
    fixed = 4 * (h * h + w * w) + 16 * 4 * h * w    # band matrices + temps headroom
    cap = max(1, batch // 2)
    for cand in (8, 4, 2, 1):
        if cand <= cap and batch % cand == 0 and fixed + cand * per_sample <= budget:
            return cand
    return 1


@functools.partial(jax.jit, static_argnames=("block_b",))
def _tsa_forward(map_5, map_4, map_3, map_2, gt, ah, aw, thres, *, block_b):
    """One fused device program: kernel + scalar epilogue for all 4 maps."""
    B, _, H, W = map_5.shape
    gt_bf = gt.astype(jnp.bfloat16)                 # 0/1 mask: exact in bf16
    p5 = map_5.astype(jnp.float32)
    p4 = map_4.astype(jnp.float32)
    p3 = map_3.astype(jnp.float32)
    p2 = map_2.astype(jnp.float32)

    raw = _tsa_stats_call(gt_bf, p5, p4, p3, p2, ah, aw, block_b)  # (B, 8, 128)
    bce_sum = raw[:, 0, :_N_MAPS].T                 # (4, B), map order [5,4,3,2]
    inter = raw[:, 1, :_N_MAPS].T
    union = raw[:, 2, :_N_MAPS].T

    # Legacy reduce='none' (truthy) => reduction='mean': one global BCE mean
    # per lateral map, broadcast over the batch (matches the PyTorch spec).
    wbce = jnp.sum(bce_sum, axis=1, keepdims=True) / float(B * H * W)  # (4,1)

    dice_coef = (2.0 * inter + 1.0) / (union + 1.0)                    # (4,B)
    under = (dice_coef < thres[:, None]).astype(jnp.float32)
    n_under = jnp.sum(under, axis=1, keepdims=True)                    # (4,1)
    n_over = float(B) - n_under
    mn = jnp.minimum(n_over, n_under) / B
    mx = jnp.maximum(n_over, n_under) / B
    mask = jnp.where(under > 0.5, 1.0 + mx, mn)                        # (4,B)

    dice_loss = 1.0 - dice_coef
    # wiou is computed-but-unused in the reference; dropped.

    losses = jnp.mean((wbce + dice_loss) * mask, axis=1)  # (4,) = [l5,l4,l3,l2]
    final_loss = jnp.sum(losses)
    return final_loss, losses


class TSAStructureLossPallas:
    """JAX/Pallas re-implementation of TSA_StructureLoss (num_classes=2)."""

    def __init__(self, alpha, num_steps, cur_step=0):
        self.alpha = float(alpha)          # cfg.TRAIN.TSA.ALPHA
        self.num_steps = int(num_steps)
        self.current_step = int(cur_step)
        self.num_classes = 2
        self.thres_history = []
        self._band_cache = {}              # n -> cached bf16 band matrix

    def step(self):
        self.current_step += 1

    def reset(self):
        self.current_step = 0

    def threshold(self):
        # Host-side bookkeeping, identical formula to the reference.
        alpha_1 = 1.0 - math.exp(-self.alpha * self.current_step / self.num_steps)
        thres = alpha_1 * (1.0 - 1.0 / self.num_classes) + 1.0 / self.num_classes
        self.thres_history.append(thres)
        return thres

    def _band(self, n):
        # Built once per spatial size; 0/1 entries, stored in bf16 (exact).
        if n not in self._band_cache:
            idx = jnp.arange(n)
            self._band_cache[n] = (
                jnp.abs(idx[:, None] - idx[None, :]) <= POOL_HALF
            ).astype(jnp.bfloat16)
        return self._band_cache[n]

    def __call__(self, outputs, gt):
        map_5, map_4, map_3, map_2 = outputs
        B, _, H, W = map_5.shape
        ah = self._band(H)
        aw = None if W == H else self._band(W)   # single matrix when square

        # The reference calls threshold()/step() once per lateral map, in the
        # evaluation order map_5, map_4, map_3, map_2.
        thres_host = []
        for _ in range(_N_MAPS):
            thres_host.append(self.threshold())
            self.step()
        thres = jnp.asarray(thres_host, jnp.float32)

        block_b = _choose_block_b(B, H, W)
        final_loss, losses = _tsa_forward(
            map_5, map_4, map_3, map_2, gt, ah, aw, thres, block_b=block_b
        )
        loss_5, loss_4, loss_3, loss_2 = losses[0], losses[1], losses[2], losses[3]
        return (final_loss, loss_2, loss_3, loss_4, loss_5)


if __name__ == "__main__":
    key = jax.random.PRNGKey(0)
    B, H, W = 2, 32, 32
    k2, k3, k4, k5, kg = jax.random.split(key, 5)

    # Four lateral prediction maps (logits), NCHW with C=1, plus binary gt.
    map_5 = jax.random.normal(k5, (B, 1, H, W), jnp.float32)
    map_4 = jax.random.normal(k4, (B, 1, H, W), jnp.float32)
    map_3 = jax.random.normal(k3, (B, 1, H, W), jnp.float32)
    map_2 = jax.random.normal(k2, (B, 1, H, W), jnp.float32)
    gt = (jax.random.uniform(kg, (B, H, W)) > 0.5).astype(jnp.float32)

    # cfg.TRAIN.TSA.ALPHA = 5.0, num_steps = 100, cur_step = 0 (deterministic)
    loss_fn = TSAStructureLossPallas(alpha=5.0, num_steps=100, cur_step=0)
    out = loss_fn((map_5, map_4, map_3, map_2), gt)
    out = jax.block_until_ready(out)
    print("KERNEL_OK")
</pallas_src>

<mosaic_0001>
module attributes {stable_mosaic.version = 11 : i64} {
  func.func @_tsa_stats_kernel(%arg0: i32, %arg1: memref<1x32x32xbf16, #tpu.memory_space<vmem>>, %arg2: memref<1x1x32x32xf32, #tpu.memory_space<vmem>>, %arg3: memref<1x1x32x32xf32, #tpu.memory_space<vmem>>, %arg4: memref<1x1x32x32xf32, #tpu.memory_space<vmem>>, %arg5: memref<1x1x32x32xf32, #tpu.memory_space<vmem>>, %arg6: memref<32x32xbf16, #tpu.memory_space<vmem>>, %arg7: memref<1x8x128xf32, #tpu.memory_space<vmem>>) attributes {dimension_semantics = [#tpu.dimension_semantics<parallel>], iteration_bounds = array<i64: 2>, scalar_prefetch = 0 : i64, scratch_operands = 0 : i64, tpu.core_type = #tpu.core_type<tc>, window_params = [{transform_indices = @transform_0, window_bounds = array<i64: 1, 32, 32>}, {transform_indices = @transform_1, window_bounds = array<i64: 1, 1, 32, 32>}, {transform_indices = @transform_2, window_bounds = array<i64: 1, 1, 32, 32>}, {transform_indices = @transform_3, window_bounds = array<i64: 1, 1, 32, 32>}, {transform_indices = @transform_4, window_bounds = array<i64: 1, 1, 32, 32>}, {pipeline_mode = #tpu.pipeline_mode<synchronous>, transform_indices = @transform_5, window_bounds = array<i64: 32, 32>}, {transform_indices = @transform_6, window_bounds = array<i64: 1, 8, 128>}]} {
    %0 = tpu.iota {dimensions = array<i32: 0>} : vector<8x128xi32>
    %1 = tpu.iota {dimensions = array<i32: 1>} : vector<8x128xi32>
    %cst = arith.constant 0.000000e+00 : f32
    %2 = vector.broadcast %cst : f32 to vector<8x128xf32>
    %c0 = arith.constant 0 : index
    %c0_0 = arith.constant 0 : index
    %c0_1 = arith.constant 0 : index
    %3 = vector.load %arg1[%c0, %c0_0, %c0_1] : memref<1x32x32xbf16, #tpu.memory_space<vmem>>, vector<1x32x32xbf16>
    %4 = vector.shape_cast %3 : vector<1x32x32xbf16> to vector<32x32xbf16>
    %5 = arith.extf %4 : vector<32x32xbf16> to vector<32x32xf32>
    %c0_2 = arith.constant 0 : index
    %c0_3 = arith.constant 0 : index
    %6 = vector.load %arg6[%c0_2, %c0_3] : memref<32x32xbf16, #tpu.memory_space<vmem>>, vector<32x32xbf16>
    %cst_4 = arith.constant dense<0.000000e+00> : vector<32x32xf32>
    %7 = tpu.matmul %4, %6, %cst_4 {dimension_numbers = #tpu.dot_dimension_numbers<[1], [0], [0], [1], [0, 0, 1, 1], [], []>} : vector<32x32xbf16>, vector<32x32xbf16>, vector<32x32xf32> -> vector<32x32xf32>
    %c0_5 = arith.constant 0 : index
    %c0_6 = arith.constant 0 : index
    %8 = vector.load %arg6[%c0_5, %c0_6] : memref<32x32xbf16, #tpu.memory_space<vmem>>, vector<32x32xbf16>
    %9 = arith.truncf %7 : vector<32x32xf32> to vector<32x32xbf16>
    %cst_7 = arith.constant dense<0.000000e+00> : vector<32x32xf32>
    %10 = tpu.matmul %8, %9, %cst_7 {dimension_numbers = #tpu.dot_dimension_numbers<[1], [0], [0], [1], [0, 0, 1, 1], [], []>} : vector<32x32xbf16>, vector<32x32xbf16>, vector<32x32xf32> -> vector<32x32xf32>
    %cst_8 = arith.constant 0.00104058278 : f32
    %11 = vector.broadcast %cst_8 : f32 to vector<32x32xf32>
    %12 = arith.mulf %10, %11 : vector<32x32xf32>
    %13 = arith.subf %12, %5 : vector<32x32xf32>
    %14 = math.absf %13 : vector<32x32xf32>
    %cst_9 = arith.constant 5.000000e+00 : f32
    %15 = vector.broadcast %cst_9 : f32 to vector<32x32xf32>
    %16 = arith.mulf %15, %14 : vector<32x32xf32>
    %cst_10 = arith.constant 1.000000e+00 : f32
    %17 = vector.broadcast %cst_10 : f32 to vector<32x32xf32>
    %18 = arith.addf %17, %16 : vector<32x32xf32>
    %19 = arith.mulf %5, %18 : vector<32x32xf32>
    %20 = vector.shape_cast %19 : vector<32x32xf32> to vector<1x32x32xf32>
    %cst_11 = arith.constant dense<0.000000e+00> : vector<1xf32>
    %21 = vector.multi_reduction <add>, %20, %cst_11 [1, 2] : vector<1x32x32xf32> to vector<1xf32>
    %22 = vector.shape_cast %21 : vector<1xf32> to vector<1x1x1xf32>
    %23 = vector.extract %22[0, 0, 0] : f32 from vector<1x1x1xf32>
    %24 = vector.broadcast %23 : f32 to vector<1x1xf32>
    %c0_12 = arith.constant 0 : index
    %c0_13 = arith.constant 0 : index
    %c0_14 = arith.constant 0 : index
    %c0_15 = arith.constant 0 : index
    %25 = vector.load %arg2[%c0_12, %c0_13, %c0_14, %c0_15] : memref<1x1x32x32xf32, #tpu.memory_space<vmem>>, vector<1x1x32x32xf32>
    %26 = vector.shape_cast %25 : vector<1x1x32x32xf32> to vector<32x32xf32>
    %27 = math.absf %26 : vector<32x32xf32>
    %cst_16 = arith.constant 0.000000e+00 : f32
    %28 = vector.broadcast %cst_16 : f32 to vector<32x32xf32>
    %29 = arith.subf %28, %27 : vector<32x32xf32>
    %30 = math.exp %29 : vector<32x32xf32>
    %cst_17 = arith.constant 1.000000e+00 : f32
    %31 = vector.broadcast %cst_17 : f32 to vector<32x32xf32>
    %32 = arith.addf %31, %30 : vector<32x32xf32>
    %cst_18 = arith.constant 1.000000e+00 : f32
    %33 = vector.broadcast %cst_18 : f32 to vector<32x32xf32>
    %34 = arith.divf %33, %32 : vector<32x32xf32>
    %cst_19 = arith.constant 0.000000e+00 : f32
    %35 = vector.broadcast %cst_19 : f32 to vector<32x32xf32>
    %36 = arith.cmpf oge, %26, %35 : vector<32x32xf32>
    %37 = arith.mulf %30, %34 : vector<32x32xf32>
    %38 = arith.select %36, %34, %37 : vector<32x32xi1>, vector<32x32xf32>
    %cst_20 = arith.constant 1.000000e+00 : f32
    %39 = vector.broadcast %cst_20 : f32 to vector<32x32xf32>
    %40 = arith.addf %39, %30 : vector<32x32xf32>
    %cst_21 = arith.constant 1.000000e+00 : f32
    %41 = vector.broadcast %cst_21 : f32 to vector<32x32xf32>
    %42 = arith.cmpf ogt, %40, %41 : vector<32x32xf32>
    %43 = math.log %40 : vector<32x32xf32>
    %44 = arith.select %42, %43, %30 : vector<32x32xi1>, vector<32x32xf32>
    %cst_22 = arith.constant 0.000000e+00 : f32
    %45 = vector.broadcast %cst_22 : f32 to vector<32x32xf32>
    %46 = arith.maximumf %26, %45 : vector<32x32xf32>
    %47 = arith.mulf %26, %5 : vector<32x32xf32>
    %48 = arith.subf %46, %47 : vector<32x32xf32>
    %49 = arith.addf %48, %44 : vector<32x32xf32>
    %50 = vector.shape_cast %49 : vector<32x32xf32> to vector<1x32x32xf32>
    %cst_23 = arith.constant dense<0.000000e+00> : vector<1xf32>
    %51 = vector.multi_reduction <add>, %50, %cst_23 [1, 2] : vector<1x32x32xf32> to vector<1xf32>
    %52 = vector.shape_cast %51 : vector<1xf32> to vector<1x1x1xf32>
    %53 = vector.extract %52[0, 0, 0] : f32 from vector<1x1x1xf32>
    %54 = vector.broadcast %53 : f32 to vector<1x1xf32>
    %55 = arith.mulf %38, %19 : vector<32x32xf32>
    %56 = vector.shape_cast %55 : vector<32x32xf32> to vector<1x32x32xf32>
    %cst_24 = arith.constant dense<0.000000e+00> : vector<1xf32>
    %57 = vector.multi_reduction <add>, %56, %cst_24 [1, 2] : vector<1x32x32xf32> to vector<1xf32>
    %58 = vector.shape_cast %57 : vector<1xf32> to vector<1x1x1xf32>
    %59 = vector.extract %58[0, 0, 0] : f32 from vector<1x1x1xf32>
    %60 = vector.broadcast %59 : f32 to vector<1x1xf32>
    %61 = arith.mulf %38, %18 : vector<32x32xf32>
    %62 = vector.shape_cast %61 : vector<32x32xf32> to vector<1x32x32xf32>
    %cst_25 = arith.constant dense<0.000000e+00> : vector<1xf32>
    %63 = vector.multi_reduction <add>, %62, %cst_25 [1, 2] : vector<1x32x32xf32> to vector<1xf32>
    %64 = vector.shape_cast %63 : vector<1xf32> to vector<1x1x1xf32>
    %65 = vector.extract %64[0, 0, 0] : f32 from vector<1x1x1xf32>
    %66 = vector.broadcast %65 : f32 to vector<1x1xf32>
    %67 = arith.addf %66, %24 : vector<1x1xf32>
    %c0_i32 = arith.constant 0 : i32
    %68 = vector.broadcast %c0_i32 : i32 to vector<8x128xi32>
    %69 = arith.cmpi eq, %1, %68 : vector<8x128xi32>
    %c0_i32_26 = arith.constant 0 : i32
    %70 = vector.broadcast %c0_i32_26 : i32 to vector<8x128xi32>
    %71 = arith.cmpi eq, %0, %70 : vector<8x128xi32>
    %72 = arith.andi %69, %71 : vector<8x128xi1>
    %73 = vector.shape_cast %54 : vector<1x1xf32> to vector<1x1xf32>
    %74 = vector.broadcast %73 : vector<1x1xf32> to vector<8x128xf32>
    %75 = arith.select %72, %74, %2 : vector<8x128xi1>, vector<8x128xf32>
    %76 = arith.addf %2, %75 : vector<8x128xf32>
    %c1_i32 = arith.constant 1 : i32
    %77 = vector.broadcast %c1_i32 : i32 to vector<8x128xi32>
    %78 = arith.cmpi eq, %0, %77 : vector<8x128xi32>
    %79 = arith.andi %69, %78 : vector<8x128xi1>
    %80 = vector.shape_cast %60 : vector<1x1xf32> to vector<1x1xf32>
    %81 = vector.broadcast %80 : vector<1x1xf32> to vector<8x128xf32>
    %82 = arith.select %79, %81, %2 : vector<8x128xi1>, vector<8x128xf32>
    %83 = arith.addf %76, %82 : vector<8x128xf32>
    %c2_i32 = arith.constant 2 : i32
    %84 = vector.broadcast %c2_i32 : i32 to vector<8x128xi32>
    %85 = arith.cmpi eq, %0, %84 : vector<8x128xi32>
    %86 = arith.andi %69, %85 : vector<8x128xi1>
    %87 = vector.shape_cast %67 : vector<1x1xf32> to vector<1x1xf32>
    %88 = vector.broadcast %87 : vector<1x1xf32> to vector<8x128xf32>
    %89 = arith.select %86, %88, %2 : vector<8x128xi1>, vector<8x128xf32>
    %90 = arith.addf %83, %89 : vector<8x128xf32>
    %c0_27 = arith.constant 0 : index
    %c0_28 = arith.constant 0 : index
    %c0_29 = arith.constant 0 : index
    %c0_30 = arith.constant 0 : index
    %91 = vector.load %arg3[%c0_27, %c0_28, %c0_29, %c0_30] : memref<1x1x32x32xf32, #tpu.memory_space<vmem>>, vector<1x1x32x32xf32>
    %92 = vector.shape_cast %91 : vector<1x1x32x32xf32> to vector<32x32xf32>
    %93 = math.absf %92 : vector<32x32xf32>
    %cst_31 = arith.constant 0.000000e+00 : f32
    %94 = vector.broadcast %cst_31 : f32 to vector<32x32xf32>
    %95 = arith.subf %94, %93 : vector<32x32xf32>
    %96 = math.exp %95 : vector<32x32xf32>
    %cst_32 = arith.constant 1.000000e+00 : f32
    %97 = vector.broadcast %cst_32 : f32 to vector<32x32xf32>
    %98 = arith.addf %97, %96 : vector<32x32xf32>
    %cst_33 = arith.constant 1.000000e+00 : f32
    %99 = vector.broadcast %cst_33 : f32 to vector<32x32xf32>
    %100 = arith.divf %99, %98 : vector<32x32xf32>
    %cst_34 = arith.constant 0.000000e+00 : f32
    %101 = vector.broadcast %cst_34 : f32 to vector<32x32xf32>
    %102 = arith.cmpf oge, %92, %101 : vector<32x32xf32>
    %103 = arith.mulf %96, %100 : vector<32x32xf32>
    %104 = arith.select %102, %100, %103 : vector<32x32xi1>, vector<32x32xf32>
    %cst_35 = arith.constant 1.000000e+00 : f32
    %105 = vector.broadcast %cst_35 : f32 to vector<32x32xf32>
    %106 = arith.addf %105, %96 : vector<32x32xf32>
    %cst_36 = arith.constant 1.000000e+00 : f32
    %107 = vector.broadcast %cst_36 : f32 to vector<32x32xf32>
    %108 = arith.cmpf ogt, %106, %107 : vector<32x32xf32>
    %109 = math.log %106 : vector<32x32xf32>
    %110 = arith.select %108, %109, %96 : vector<32x32xi1>, vector<32x32xf32>
    %cst_37 = arith.constant 0.000000e+00 : f32
    %111 = vector.broadcast %cst_37 : f32 to vector<32x32xf32>
    %112 = arith.maximumf %92, %111 : vector<32x32xf32>
    %113 = arith.mulf %92, %5 : vector<32x32xf32>
    %114 = arith.subf %112, %113 : vector<32x32xf32>
    %115 = arith.addf %114, %110 : vector<32x32xf32>
    %116 = vector.shape_cast %115 : vector<32x32xf32> to vector<1x32x32xf32>
    %cst_38 = arith.constant dense<0.000000e+00> : vector<1xf32>
    %117 = vector.multi_reduction <add>, %116, %cst_38 [1, 2] : vector<1x32x32xf32> to vector<1xf32>
    %118 = vector.shape_cast %117 : vector<1xf32> to vector<1x1x1xf32>
    %119 = vector.extract %118[0, 0, 0] : f32 from vector<1x1x1xf32>
    %120 = vector.broadcast %119 : f32 to vector<1x1xf32>
    %121 = arith.mulf %104, %19 : vector<32x32xf32>
    %122 = vector.shape_cast %121 : vector<32x32xf32> to vector<1x32x32xf32>
    %cst_39 = arith.constant dense<0.000000e+00> : vector<1xf32>
    %123 = vector.multi_reduction <add>, %122, %cst_39 [1, 2] : vector<1x32x32xf32> to vector<1xf32>
    %124 = vector.shape_cast %123 : vector<1xf32> to vector<1x1x1xf32>
    %125 = vector.extract %124[0, 0, 0] : f32 from vector<1x1x1xf32>
    %126 = vector.broadcast %125 : f32 to vector<1x1xf32>
    %127 = arith.mulf %104, %18 : vector<32x32xf32>
    %128 = vector.shape_cast %127 : vector<32x32xf32> to vector<1x32x32xf32>
    %cst_40 = arith.constant dense<0.000000e+00> : vector<1xf32>
    %129 = vector.multi_reduction <add>, %128, %cst_40 [1, 2] : vector<1x32x32xf32> to vector<1xf32>
    %130 = vector.shape_cast %129 : vector<1xf32> to vector<1x1x1xf32>
    %131 = vector.extract %130[0, 0, 0] : f32 from vector<1x1x1xf32>
    %132 = vector.broadcast %131 : f32 to vector<1x1xf32>
    %133 = arith.addf %132, %24 : vector<1x1xf32>
    %c1_i32_41 = arith.constant 1 : i32
    %134 = vector.broadcast %c1_i32_41 : i32 to vector<8x128xi32>
    %135 = arith.cmpi eq, %1, %134 : vector<8x128xi32>
    %c0_i32_42 = arith.constant 0 : i32
    %136 = vector.broadcast %c0_i32_42 : i32 to vector<8x128xi32>
    %137 = arith.cmpi eq, %0, %136 : vector<8x128xi32>
    %138 = arith.andi %135, %137 : vector<8x128xi1>
    %139 = vector.shape_cast %120 : vector<1x1xf32> to vector<1x1xf32>
    %140 = vector.broadcast %139 : vector<1x1xf32> to vector<8x128xf32>
    %141 = arith.select %138, %140, %2 : vector<8x128xi1>, vector<8x128xf32>
    %142 = arith.addf %90, %141 : vector<8x128xf32>
    %c1_i32_43 = arith.constant 1 : i32
    %143 = vector.broadcast %c1_i32_43 : i32 to vector<8x128xi32>
    %144 = arith.cmpi eq, %0, %143 : vector<8x128xi32>
    %145 = arith.andi %135, %144 : vector<8x128xi1>
    %146 = vector.shape_cast %126 : vector<1x1xf32> to vector<1x1xf32>
    %147 = vector.broadcast %146 : vector<1x1xf32> to vector<8x128xf32>
    %148 = arith.select %145, %147, %2 : vector<8x128xi1>, vector<8x128xf32>
    %149 = arith.addf %142, %148 : vector<8x128xf32>
    %c2_i32_44 = arith.constant 2 : i32
    %150 = vector.broadcast %c2_i32_44 : i32 to vector<8x128xi32>
    %151 = arith.cmpi eq, %0, %150 : vector<8x128xi32>
    %152 = arith.andi %135, %151 : vector<8x128xi1>
    %153 = vector.shape_cast %133 : vector<1x1xf32> to vector<1x1xf32>
    %154 = vector.broadcast %153 : vector<1x1xf32> to vector<8x128xf32>
    %155 = arith.select %152, %154, %2 : vector<8x128xi1>, vector<8x128xf32>
    %156 = arith.addf %149, %155 : vector<8x128xf32>
    %c0_45 = arith.constant 0 : index
    %c0_46 = arith.constant 0 : index
    %c0_47 = arith.constant 0 : index
    %c0_48 = arith.constant 0 : index
    %157 = vector.load %arg4[%c0_45, %c0_46, %c0_47, %c0_48] : memref<1x1x32x32xf32, #tpu.memory_space<vmem>>, vector<1x1x32x32xf32>
    %158 = vector.shape_cast %157 : vector<1x1x32x32xf32> to vector<32x32xf32>
    %159 = math.absf %158 : vector<32x32xf32>
    %cst_49 = arith.constant 0.000000e+00 : f32
    %160 = vector.broadcast %cst_49 : f32 to vector<32x32xf32>
    %161 = arith.subf %160, %159 : vector<32x32xf32>
    %162 = math.exp %161 : vector<32x32xf32>
    %cst_50 = arith.constant 1.000000e+00 : f32
    %163 = vector.broadcast %cst_50 : f32 to vector<32x32xf32>
    %164 = arith.addf %163, %162 : vector<32x32xf32>
    %cst_51 = arith.constant 1.000000e+00 : f32
    %165 = vector.broadcast %cst_51 : f32 to vector<32x32xf32>
    %166 = arith.divf %165, %164 : vector<32x32xf32>
    %cst_52 = arith.constant 0.000000e+00 : f32
    %167 = vector.broadcast %cst_52 : f32 to vector<32x32xf32>
    %168 = arith.cmpf oge, %158, %167 : vector<32x32xf32>
    %169 = arith.mulf %162, %166 : vector<32x32xf32>
    %170 = arith.select %168, %166, %169 : vector<32x32xi1>, vector<32x32xf32>
    %cst_53 = arith.constant 1.000000e+00 : f32
    %171 = vector.broadcast %cst_53 : f32 to vector<32x32xf32>
    %172 = arith.addf %171, %162 : vector<32x32xf32>
    %cst_54 = arith.constant 1.000000e+00 : f32
    %173 = vector.broadcast %cst_54 : f32 to vector<32x32xf32>
    %174 = arith.cmpf ogt, %172, %173 : vector<32x32xf32>
    %175 = math.log %172 : vector<32x32xf32>
    %176 = arith.select %174, %175, %162 : vector<32x32xi1>, vector<32x32xf32>
    %cst_55 = arith.constant 0.000000e+00 : f32
    %177 = vector.broadcast %cst_55 : f32 to vector<32x32xf32>
    %178 = arith.maximumf %158, %177 : vector<32x32xf32>
    %179 = arith.mulf %158, %5 : vector<32x32xf32>
    %180 = arith.subf %178, %179 : vector<32x32xf32>
    %181 = arith.addf %180, %176 : vector<32x32xf32>
    %182 = vector.shape_cast %181 : vector<32x32xf32> to vector<1x32x32xf32>
    %cst_56 = arith.constant dense<0.000000e+00> : vector<1xf32>
    %183 = vector.multi_reduction <add>, %182, %cst_56 [1, 2] : vector<1x32x32xf32> to vector<1xf32>
    %184 = vector.shape_cast %183 : vector<1xf32> to vector<1x1x1xf32>
    %185 = vector.extract %184[0, 0, 0] : f32 from vector<1x1x1xf32>
    %186 = vector.broadcast %185 : f32 to vector<1x1xf32>
    %187 = arith.mulf %170, %19 : vector<32x32xf32>
    %188 = vector.shape_cast %187 : vector<32x32xf32> to vector<1x32x32xf32>
    %cst_57 = arith.constant dense<0.000000e+00> : vector<1xf32>
    %189 = vector.multi_reduction <add>, %188, %cst_57 [1, 2] : vector<1x32x32xf32> to vector<1xf32>
    %190 = vector.shape_cast %189 : vector<1xf32> to vector<1x1x1xf32>
    %191 = vector.extract %190[0, 0, 0] : f32 from vector<1x1x1xf32>
    %192 = vector.broadcast %191 : f32 to vector<1x1xf32>
    %193 = arith.mulf %170, %18 : vector<32x32xf32>
    %194 = vector.shape_cast %193 : vector<32x32xf32> to vector<1x32x32xf32>
    %cst_58 = arith.constant dense<0.000000e+00> : vector<1xf32>
    %195 = vector.multi_reduction <add>, %194, %cst_58 [1, 2] : vector<1x32x32xf32> to vector<1xf32>
    %196 = vector.shape_cast %195 : vector<1xf32> to vector<1x1x1xf32>
    %197 = vector.extract %196[0, 0, 0] : f32 from vector<1x1x1xf32>
    %198 = vector.broadcast %197 : f32 to vector<1x1xf32>
    %199 = arith.addf %198, %24 : vector<1x1xf32>
    %c2_i32_59 = arith.constant 2 : i32
    %200 = vector.broadcast %c2_i32_59 : i32 to vector<8x128xi32>
    %201 = arith.cmpi eq, %1, %200 : vector<8x128xi32>
    %c0_i32_60 = arith.constant 0 : i32
    %202 = vector.broadcast %c0_i32_60 : i32 to vector<8x128xi32>
    %203 = arith.cmpi eq, %0, %202 : vector<8x128xi32>
    %204 = arith.andi %201, %203 : vector<8x128xi1>
    %205 = vector.shape_cast %186 : vector<1x1xf32> to vector<1x1xf32>
    %206 = vector.broadcast %205 : vector<1x1xf32> to vector<8x128xf32>
    %207 = arith.select %204, %206, %2 : vector<8x128xi1>, vector<8x128xf32>
    %208 = arith.addf %156, %207 : vector<8x128xf32>
    %c1_i32_61 = arith.constant 1 : i32
    %209 = vector.broadcast %c1_i32_61 : i32 to vector<8x128xi32>
    %210 = arith.cmpi eq, %0, %209 : vector<8x128xi32>
    %211 = arith.andi %201, %210 : vector<8x128xi1>
    %212 = vector.shape_cast %192 : vector<1x1xf32> to vector<1x1xf32>
    %213 = vector.broadcast %212 : vector<1x1xf32> to vector<8x128xf32>
    %214 = arith.select %211, %213, %2 : vector<8x128xi1>, vector<8x128xf32>
    %215 = arith.addf %208, %214 : vector<8x128xf32>
    %c2_i32_62 = arith.constant 2 : i32
    %216 = vector.broadcast %c2_i32_62 : i32 to vector<8x128xi32>
    %217 = arith.cmpi eq, %0, %216 : vector<8x128xi32>
    %218 = arith.andi %201, %217 : vector<8x128xi1>
    %219 = vector.shape_cast %199 : vector<1x1xf32> to vector<1x1xf32>
    %220 = vector.broadcast %219 : vector<1x1xf32> to vector<8x128xf32>
    %221 = arith.select %218, %220, %2 : vector<8x128xi1>, vector<8x128xf32>
    %222 = arith.addf %215, %221 : vector<8x128xf32>
    %c0_63 = arith.constant 0 : index
    %c0_64 = arith.constant 0 : index
    %c0_65 = arith.constant 0 : index
    %c0_66 = arith.constant 0 : index
    %223 = vector.load %arg5[%c0_63, %c0_64, %c0_65, %c0_66] : memref<1x1x32x32xf32, #tpu.memory_space<vmem>>, vector<1x1x32x32xf32>
    %224 = vector.shape_cast %223 : vector<1x1x32x32xf32> to vector<32x32xf32>
    %225 = math.absf %224 : vector<32x32xf32>
    %cst_67 = arith.constant 0.000000e+00 : f32
    %226 = vector.broadcast %cst_67 : f32 to vector<32x32xf32>
    %227 = arith.subf %226, %225 : vector<32x32xf32>
    %228 = math.exp %227 : vector<32x32xf32>
    %cst_68 = arith.constant 1.000000e+00 : f32
    %229 = vector.broadcast %cst_68 : f32 to vector<32x32xf32>
    %230 = arith.addf %229, %228 : vector<32x32xf32>
    %cst_69 = arith.constant 1.000000e+00 : f32
    %231 = vector.broadcast %cst_69 : f32 to vector<32x32xf32>
    %232 = arith.divf %231, %230 : vector<32x32xf32>
    %cst_70 = arith.constant 0.000000e+00 : f32
    %233 = vector.broadcast %cst_70 : f32 to vector<32x32xf32>
    %234 = arith.cmpf oge, %224, %233 : vector<32x32xf32>
    %235 = arith.mulf %228, %232 : vector<32x32xf32>
    %236 = arith.select %234, %232, %235 : vector<32x32xi1>, vector<32x32xf32>
    %cst_71 = arith.constant 1.000000e+00 : f32
    %237 = vector.broadcast %cst_71 : f32 to vector<32x32xf32>
    %238 = arith.addf %237, %228 : vector<32x32xf32>
    %cst_72 = arith.constant 1.000000e+00 : f32
    %239 = vector.broadcast %cst_72 : f32 to vector<32x32xf32>
    %240 = arith.cmpf ogt, %238, %239 : vector<32x32xf32>
    %241 = math.log %238 : vector<32x32xf32>
    %242 = arith.select %240, %241, %228 : vector<32x32xi1>, vector<32x32xf32>
    %cst_73 = arith.constant 0.000000e+00 : f32
    %243 = vector.broadcast %cst_73 : f32 to vector<32x32xf32>
    %244 = arith.maximumf %224, %243 : vector<32x32xf32>
    %245 = arith.mulf %224, %5 : vector<32x32xf32>
    %246 = arith.subf %244, %245 : vector<32x32xf32>
    %247 = arith.addf %246, %242 : vector<32x32xf32>
    %248 = vector.shape_cast %247 : vector<32x32xf32> to vector<1x32x32xf32>
    %cst_74 = arith.constant dense<0.000000e+00> : vector<1xf32>
    %249 = vector.multi_reduction <add>, %248, %cst_74 [1, 2] : vector<1x32x32xf32> to vector<1xf32>
    %250 = vector.shape_cast %249 : vector<1xf32> to vector<1x1x1xf32>
    %251 = vector.extract %250[0, 0, 0] : f32 from vector<1x1x1xf32>
    %252 = vector.broadcast %251 : f32 to vector<1x1xf32>
    %253 = arith.mulf %236, %19 : vector<32x32xf32>
    %254 = vector.shape_cast %253 : vector<32x32xf32> to vector<1x32x32xf32>
    %cst_75 = arith.constant dense<0.000000e+00> : vector<1xf32>
    %255 = vector.multi_reduction <add>, %254, %cst_75 [1, 2] : vector<1x32x32xf32> to vector<1xf32>
    %256 = vector.shape_cast %255 : vector<1xf32> to vector<1x1x1xf32>
    %257 = vector.extract %256[0, 0, 0] : f32 from vector<1x1x1xf32>
    %258 = vector.broadcast %257 : f32 to vector<1x1xf32>
    %259 = arith.mulf %236, %18 : vector<32x32xf32>
    %260 = vector.shape_cast %259 : vector<32x32xf32> to vector<1x32x32xf32>
    %cst_76 = arith.constant dense<0.000000e+00> : vector<1xf32>
    %261 = vector.multi_reduction <add>, %260, %cst_76 [1, 2] : vector<1x32x32xf32> to vector<1xf32>
    %262 = vector.shape_cast %261 : vector<1xf32> to vector<1x1x1xf32>
    %263 = vector.extract %262[0, 0, 0] : f32 from vector<1x1x1xf32>
    %264 = vector.broadcast %263 : f32 to vector<1x1xf32>
    %265 = arith.addf %264, %24 : vector<1x1xf32>
    %c3_i32 = arith.constant 3 : i32
    %266 = vector.broadcast %c3_i32 : i32 to vector<8x128xi32>
    %267 = arith.cmpi eq, %1, %266 : vector<8x128xi32>
    %c0_i32_77 = arith.constant 0 : i32
    %268 = vector.broadcast %c0_i32_77 : i32 to vector<8x128xi32>
    %269 = arith.cmpi eq, %0, %268 : vector<8x128xi32>
    %270 = arith.andi %267, %269 : vector<8x128xi1>
    %271 = vector.shape_cast %252 : vector<1x1xf32> to vector<1x1xf32>
    %272 = vector.broadcast %271 : vector<1x1xf32> to vector<8x128xf32>
    %273 = arith.select %270, %272, %2 : vector<8x128xi1>, vector<8x128xf32>
    %274 = arith.addf %222, %273 : vector<8x128xf32>
    %c1_i32_78 = arith.constant 1 : i32
    %275 = vector.broadcast %c1_i32_78 : i32 to vector<8x128xi32>
    %276 = arith.cmpi eq, %0, %275 : vector<8x128xi32>
    %277 = arith.andi %267, %276 : vector<8x128xi1>
    %278 = vector.shape_cast %258 : vector<1x1xf32> to vector<1x1xf32>
    %279 = vector.broadcast %278 : vector<1x1xf32> to vector<8x128xf32>
    %280 = arith.select %277, %279, %2 : vector<8x128xi1>, vector<8x128xf32>
    %281 = arith.addf %274, %280 : vector<8x128xf32>
    %c2_i32_79 = arith.constant 2 : i32
    %282 = vector.broadcast %c2_i32_79 : i32 to vector<8x128xi32>
    %283 = arith.cmpi eq, %0, %282 : vector<8x128xi32>
    %284 = arith.andi %267, %283 : vector<8x128xi1>
    %285 = vector.shape_cast %265 : vector<1x1xf32> to vector<1x1xf32>
    %286 = vector.broadcast %285 : vector<1x1xf32> to vector<8x128xf32>
    %287 = arith.select %284, %286, %2 : vector<8x128xi1>, vector<8x128xf32>
    %288 = arith.addf %281, %287 : vector<8x128xf32>
    %c0_80 = arith.constant 0 : index
    %c0_81 = arith.constant 0 : index
    %c0_82 = arith.constant 0 : index
    %289 = vector.load %arg7[%c0_80, %c0_81, %c0_82] : memref<1x8x128xf32, #tpu.memory_space<vmem>>, vector<1x8x128xf32>
    %290 = vector.shape_cast %289 : vector<1x8x128xf32> to vector<8x128xf32>
    %291 = vector.shape_cast %288 : vector<8x128xf32> to vector<1x8x128xf32>
    tpu.vector_store %arg7[%c0_80, %c0_81, %c0_82], %291 {strides = array<i32>} : memref<1x8x128xf32, #tpu.memory_space<vmem>>, vector<1x8x128xf32>,
    return
  }
  func.func @transform_0(%arg0: i32) -> (i32, i32, i32) {
    %c0_i32 = arith.constant 0 : i32
    %c0_i32_0 = arith.constant 0 : i32
    %c0_i32_1 = arith.constant 0 : i32
    return %arg0, %c0_i32, %c0_i32_0 : i32, i32, i32
  }
  func.func @transform_1(%arg0: i32) -> (i32, i32, i32, i32) {
    %c0_i32 = arith.constant 0 : i32
    %c0_i32_0 = arith.constant 0 : i32
    %c0_i32_1 = arith.constant 0 : i32
    %c0_i32_2 = arith.constant 0 : i32
    return %arg0, %c0_i32, %c0_i32_0, %c0_i32_1 : i32, i32, i32, i32
  }
  func.func @transform_2(%arg0: i32) -> (i32, i32, i32, i32) {
    %c0_i32 = arith.constant 0 : i32
    %c0_i32_0 = arith.constant 0 : i32
    %c0_i32_1 = arith.constant 0 : i32
    %c0_i32_2 = arith.constant 0 : i32
    return %arg0, %c0_i32, %c0_i32_0, %c0_i32_1 : i32, i32, i32, i32
  }
  func.func @transform_3(%arg0: i32) -> (i32, i32, i32, i32) {
    %c0_i32 = arith.constant 0 : i32
    %c0_i32_0 = arith.constant 0 : i32
    %c0_i32_1 = arith.constant 0 : i32
    %c0_i32_2 = arith.constant 0 : i32
    return %arg0, %c0_i32, %c0_i32_0, %c0_i32_1 : i32, i32, i32, i32
  }
  func.func @transform_4(%arg0: i32) -> (i32, i32, i32, i32) {
    %c0_i32 = arith.constant 0 : i32
    %c0_i32_0 = arith.constant 0 : i32
    %c0_i32_1 = arith.constant 0 : i32
    %c0_i32_2 = arith.constant 0 : i32
    return %arg0, %c0_i32, %c0_i32_0, %c0_i32_1 : i32, i32, i32, i32
  }
  func.func @transform_5(%arg0: i32) -> (i32, i32) {
    %c0_i32 = arith.constant 0 : i32
    %c0_i32_0 = arith.constant 0 : i32
    %c0_i32_1 = arith.constant 0 : i32
    return %c0_i32, %c0_i32_0 : i32, i32
  }
  func.func @transform_6(%arg0: i32) -> (i32, i32, i32) {
    %c0_i32 = arith.constant 0 : i32
    %c0_i32_0 = arith.constant 0 : i32
    %c0_i32_1 = arith.constant 0 : i32
    return %arg0, %c0_i32, %c0_i32_0 : i32, i32, i32
  }
}

</mosaic_0001>

<llo_original>
// kernel: _tsa_forward.1
$region0: #{_tsa_forward.1}
  #allocation0 [shape = 'u32[]', space=smem, size = 0x4, offset = 0x4, fixed_abs, tag = 'smem constant byte address 0x4 - core index']
  #allocation1 [shape = 'u32[72,128]{1,0:T(1,128)}', space=vmem, size = 0x9000, scoped, tag = 'internal scratch']
  %s0 = inlined_call_operand.vmem [shape: bf16[2,32,32], index: 0, kind: input, shape index: {}]
  %s1 = inlined_call_operand.vmem [shape: f32[2,1,32,32], index: 1, kind: input, shape index: {}]
  %s2 = inlined_call_operand.hbm [shape: f32[2,1,32,32], index: 2, kind: input, shape index: {}]
  %s3 = inlined_call_operand.hbm [shape: f32[2,1,32,32], index: 3, kind: input, shape index: {}]
  %s4 = inlined_call_operand.hbm [shape: f32[2,1,32,32], index: 4, kind: input, shape index: {}]
  %s5 = inlined_call_operand.vmem [shape: bf16[32,32], index: 5, kind: input, shape index: {}]
  %s6 = inlined_call_operand.vmem [shape: f32[2,8,128], index: 6, kind: output, shape index: {}]
  %s7 = sld [smem:[#allocation0]]
  $region69: #{_tsa_forward.1} parent=0
    _
  %s9 = ssub.s32 1, %s7
  %s10 = scalar_select 0, %s9, %s7
  $region1: #{_tsa_forward.1} parent=0
    #allocation2 [shape = 'u8[32768]{0}', space=vmem, size = 0x8000, scoped, tag = 'input window, operand 2']
    #allocation3 [shape = 's32[2]{0}', space=sflag, size = 0x8, scoped, tag = 'scoped memory for _tsa_forward.1']
    #allocation4 [shape = 'u8[32768]{0}', space=vmem, size = 0x8000, scoped, tag = 'input window, operand 3']
    #allocation5 [shape = 's32[2]{0}', space=sflag, size = 0x8, scoped, tag = 'scoped memory for _tsa_forward.1']
    #allocation6 [shape = 'u8[32768]{0}', space=vmem, size = 0x8000, scoped, tag = 'input window, operand 4']
    %11 = vsyncpa [#allocation3], 0
    %s12 = scalar_lea.sflag [#allocation3], 1
    %13 = vsyncpa %s12, 0
    %14 = vsyncpa [#allocation5], 0
    %s15 = scalar_lea.sflag [#allocation5], 1
    %16 = vsyncpa %s15, 0
    loop: start=0, step=1, limit=4
    $region2: #{_tsa_forward.1} parent=1 // loop_pre_header
      _
    $region3: #{_tsa_forward.1} parent=1 // loop_header
      %s18 = sphi 0, %s22
      %p19 = scmp.ge.s32.totalorder %s18, 4
      %s28 = sphi 0, %s30
      %s31 = sphi 0, %s28
      %s32 = sphi 0, %s31
      %s48 = sphi 0, %s32
      %s54 = sphi 0, %s56
      %s57 = sphi 0, %s54
      %s58 = sphi 0, %s57
      %s74 = sphi 0, %s58
      %s80 = sphi 0, %s82
      %s83 = sphi 0, %s80
      %s84 = sphi 0, %s83
      %s100 = sphi 0, %s84
      %s106 = sphi 0, %s108
      %s109 = sphi 0, %s106
      %s110 = sphi 0, %s109
      %s126 = sphi 0, %s110
      %s132 = sphi 0, %s134
      %s135 = sphi 0, %s132
      %s136 = sphi 0, %s135
      %s152 = sphi 0, %s136
      %s156 = sphi 0, %s156
      %s158 = sphi 0, %s156
      %s159 = sphi 0, %s158
      %s173 = sphi 0, %s159
      %s179 = sphi 0, %s181
      %s182 = sphi 0, %s179
      %s183 = sphi 0, %s182
      %s199 = sphi 0, %s183
    $region4: #{_tsa_forward.1} parent=1 // loop_header_branch
      %21 = sbr.rel (%p19) target = $region8
    $region5: #{_tsa_forward.1} parent=1 // loop_body
      %s23 = ssub.s32 %s18, 1
      %s24 = ssub.s32 %s18, 2
      %s25 = sadd.s32 %s18, 1
      %s26 = ssub.s32 %s18, %s25
      %p27 = scmp.eq.s32.totalorder %s26, 0
      %s29 = sadd.s32 %s28, 1
      %s30 = scalar_select %p27, %s28, %s29
      %p33 = pneg %p27
      %p34 = scmp.eq.s32.totalorder %s18, 1
      %p35 = por %p33, %p34
      %p36 = scmp.ne.s32.totalorder %s28, %s31
      %p37 = scmp.eq.s32.totalorder %s18, 0
      %p38 = por %p36, %p37
      %p39 = scmp.ne.s32.totalorder %s28, %s31
      %p40 = scmp.eq.s32.totalorder %s23, 1
      %p41 = por %p39, %p40
      %p42 = scmp.ne.s32.totalorder %s31, %s32
      %p43 = scmp.eq.s32.totalorder %s23, 0
      %p44 = por %p42, %p43
      %p45 = scmp.ne.s32.totalorder %s31, %s32
      %p46 = scmp.eq.s32.totalorder %s24, 1
      %p47 = por %p45, %p46
      %p49 = scmp.ne.s32.totalorder %s32, %s48
      %p50 = scmp.eq.s32.totalorder %s24, 0
      %p51 = por %p49, %p50
      %s52 = ssub.s32 %s18, %s25
      %p53 = scmp.eq.s32.totalorder %s52, 0
      %s55 = sadd.s32 %s54, 1
      %s56 = scalar_select %p53, %s54, %s55
      %p59 = pneg %p53
      %p60 = scmp.eq.s32.totalorder %s18, 1
      %p61 = por %p59, %p60
      %p62 = scmp.ne.s32.totalorder %s54, %s57
      %p63 = scmp.eq.s32.totalorder %s18, 0
      %p64 = por %p62, %p63
      %p65 = scmp.ne.s32.totalorder %s54, %s57
      %p66 = scmp.eq.s32.totalorder %s23, 1
      %p67 = por %p65, %p66
      %p68 = scmp.ne.s32.totalorder %s57, %s58
      %p69 = scmp.eq.s32.totalorder %s23, 0
      %p70 = por %p68, %p69
      %p71 = scmp.ne.s32.totalorder %s57, %s58
      %p72 = scmp.eq.s32.totalorder %s24, 1
      %p73 = por %p71, %p72
      %p75 = scmp.ne.s32.totalorder %s58, %s74
      %p76 = scmp.eq.s32.totalorder %s24, 0
      %p77 = por %p75, %p76
      %s78 = ssub.s32 %s18, %s25
      %p79 = scmp.eq.s32.totalorder %s78, 0
      %s81 = sadd.s32 %s80, 1
      %s82 = scalar_select %p79, %s80, %s81
      %p85 = pneg %p79
      %p86 = scmp.eq.s32.totalorder %s18, 1
      %p87 = por %p85, %p86
      %p88 = scmp.ne.s32.totalorder %s80, %s83
      %p89 = scmp.eq.s32.totalorder %s18, 0
      %p90 = por %p88, %p89
      %p91 = scmp.ne.s32.totalorder %s80, %s83
      %p92 = scmp.eq.s32.totalorder %s23, 1
      %p93 = por %p91, %p92
      %p94 = scmp.ne.s32.totalorder %s83, %s84
      %p95 = scmp.eq.s32.totalorder %s23, 0
      %p96 = por %p94, %p95
      %p97 = scmp.ne.s32.totalorder %s83, %s84
      %p98 = scmp.eq.s32.totalorder %s24, 1
      %p99 = por %p97, %p98
      %p101 = scmp.ne.s32.totalorder %s84, %s100
      %p102 = scmp.eq.s32.totalorder %s24, 0
      %p103 = por %p101, %p102
      %s104 = ssub.s32 %s18, %s25
      %p105 = scmp.eq.s32.totalorder %s104, 0
      %s107 = sadd.s32 %s106, 1
      %s108 = scalar_select %p105, %s106, %s107
      %p111 = pneg %p105
      %p112 = scmp.eq.s32.totalorder %s18, 1
      %p113 = por %p111, %p112
      %p114 = scmp.ne.s32.totalorder %s106, %s109
      %p115 = scmp.eq.s32.totalorder %s18, 0
      %p116 = por %p114, %p115
      %p117 = scmp.ne.s32.totalorder %s106, %s109
      %p118 = scmp.eq.s32.totalorder %s23, 1
      %p119 = por %p117, %p118
      %p120 = scmp.ne.s32.totalorder %s109, %s110
      %p121 = scmp.eq.s32.totalorder %s23, 0
      %p122 = por %p120, %p121
      %p123 = scmp.ne.s32.totalorder %s109, %s110
      %p124 = scmp.eq.s32.totalorder %s24, 1
      %p125 = por %p123, %p124
      %p127 = scmp.ne.s32.totalorder %s110, %s126
      %p128 = scmp.eq.s32.totalorder %s24, 0
      %p129 = por %p127, %p128
      %s130 = ssub.s32 %s18, %s25
      %p131 = scmp.eq.s32.totalorder %s130, 0
      %s133 = sadd.s32 %s132, 1
      %s134 = scalar_select %p131, %s132, %s133
      %p137 = pneg %p131
      %p138 = scmp.eq.s32.totalorder %s18, 1
      %p139 = por %p137, %p138
      %p140 = scmp.ne.s32.totalorder %s132, %s135
      %p141 = scmp.eq.s32.totalorder %s18, 0
      %p142 = por %p140, %p141
      %p143 = scmp.ne.s32.totalorder %s132, %s135
      %p144 = scmp.eq.s32.totalorder %s23, 1
      %p145 = por %p143, %p144
      %p146 = scmp.ne.s32.totalorder %s135, %s136
      %p147 = scmp.eq.s32.totalorder %s23, 0
      %p148 = por %p146, %p147
      %p149 = scmp.ne.s32.totalorder %s135, %s136
      %p150 = scmp.eq.s32.totalorder %s24, 1
      %p151 = por %p149, %p150
      %p153 = scmp.ne.s32.totalorder %s136, %s152
      %p154 = scmp.eq.s32.totalorder %s24, 0
      %p155 = por %p153, %p154
      %s157 = sadd.s32 %s156, 1
      %p160 = scmp.eq.s32.totalorder %s18, 1
      %p161 = scmp.ne.s32.totalorder %s156, %s158
      %p162 = scmp.eq.s32.totalorder %s18, 0
      %p163 = por %p161, %p162
      %p164 = scmp.ne.s32.totalorder %s156, %s158
      %p165 = scmp.eq.s32.totalorder %s23, 1
      %p166 = por %p164, %p165
      %p167 = scmp.ne.s32.totalorder %s158, %s159
      %p168 = scmp.eq.s32.totalorder %s23, 0
      %p169 = por %p167, %p168
      %p170 = scmp.ne.s32.totalorder %s158, %s159
      %p171 = scmp.eq.s32.totalorder %s24, 1
      %p172 = por %p170, %p171
      %p174 = scmp.ne.s32.totalorder %s159, %s173
      %p175 = scmp.eq.s32.totalorder %s24, 0
      %p176 = por %p174, %p175
      %s177 = ssub.s32 %s18, %s25
      %p178 = scmp.eq.s32.totalorder %s177, 0
      %s180 = sadd.s32 %s179, 1
      %s181 = scalar_select %p178, %s179, %s180
      %p184 = pneg %p178
      %p185 = scmp.eq.s32.totalorder %s18, 1
      %p186 = por %p184, %p185
      %p187 = scmp.ne.s32.totalorder %s179, %s182
      %p188 = scmp.eq.s32.totalorder %s18, 0
      %p189 = por %p187, %p188
      %p190 = scmp.ne.s32.totalorder %s179, %s182
      %p191 = scmp.eq.s32.totalorder %s23, 1
      %p192 = por %p190, %p191
      %p193 = scmp.ne.s32.totalorder %s182, %s183
      %p194 = scmp.eq.s32.totalorder %s23, 0
      %p195 = por %p193, %p194
      %p196 = scmp.ne.s32.totalorder %s182, %s183
      %p197 = scmp.eq.s32.totalorder %s24, 1
      %p198 = por %p196, %p197
      %p200 = scmp.ne.s32.totalorder %s183, %s199
      %p201 = scmp.eq.s32.totalorder %s24, 0
      %p202 = por %p200, %p201
      %p203 = scmp.le.s32.totalorder 1, %s18
      %p204 = scmp.lt.s32.totalorder %s18, 3
      %p205 = pnand %p203, %p204
      %p206 = pneg %p205
      // Predicated region
      $region9: #{_tsa_forward.1} parent=5 // pred_check
        _
      $region10: #{_tsa_forward.1} parent=5 // pred_check_branch
        %208 = sbr.rel (%p205) target = $region12
      $region11: #{_tsa_forward.1} parent=5 // pred_region
        %s209 = ssub.s32 %s18, 1
        // Predicated region
        $region13: #{_tsa_forward.1} parent=11 // pred_check
          %p210 = pneg %p169
        $region14: #{_tsa_forward.1} parent=11 // pred_check_branch
          %212 = sbr.rel (%p210) target = $region16
        $region15: #{_tsa_forward.1} parent=11 // pred_region
          _
        $region16: #{_tsa_forward.1} parent=11 // pred_fallthru
          _
      $region12: #{_tsa_forward.1} parent=5 // pred_fallthru
        _
      %p213 = scmp.lt.s32.totalorder %s18, 2
      // Predicated region
      $region17: #{_tsa_forward.1} parent=5 // pred_check
        %p214 = pneg %p213
      $region18: #{_tsa_forward.1} parent=5 // pred_check_branch
        %216 = sbr.rel (%p214) target = $region20
      $region19: #{_tsa_forward.1} parent=5 // pred_region
        // Predicated region
        $region21: #{_tsa_forward.1} parent=19 // pred_check
          %p217 = pneg %p38
        $region22: #{_tsa_forward.1} parent=19 // pred_check_branch
          %219 = sbr.rel (%p217) target = $region24
        $region23: #{_tsa_forward.1} parent=19 // pred_region
          %p220 = scmp.lt.s32.totalorder %s18, 1
          %s221 = scalar_select %p220, %s18, 1
          %s222 = smul.addr %s221, 4
          %s223 = smul.addr %s222, 4
          %s224 = scalar_lea.vmem %s0, %s223
        $region24: #{_tsa_forward.1} parent=19 // pred_fallthru
          _
        // Predicated region
        $region25: #{_tsa_forward.1} parent=19 // pred_check
          %p225 = pneg %p64
        $region26: #{_tsa_forward.1} parent=19 // pred_check_branch
          %227 = sbr.rel (%p225) target = $region28
        $region27: #{_tsa_forward.1} parent=19 // pred_region
          %p228 = scmp.lt.s32.totalorder %s18, 1
          %s229 = scalar_select %p228, %s18, 1
          %s230 = smul.addr %s229, 4
          %s231 = smul.addr %s230, 8
          %s232 = scalar_lea.vmem %s1, %s231
        $region28: #{_tsa_forward.1} parent=19 // pred_fallthru
          _
        // Predicated region
        $region29: #{_tsa_forward.1} parent=19 // pred_check
          %p233 = pneg %p90
        $region30: #{_tsa_forward.1} parent=19 // pred_check_branch
          %235 = sbr.rel (%p233) target = $region32
        $region31: #{_tsa_forward.1} parent=19 // pred_region
          %s236 = sand.u32 %s80, 1
          %s237 = scalar_lea.sflag [#allocation3], %s236
          %s238 = sand.u32 %s80, 1
          %s239 = smul.addr %s238, 32
          %s240 = scalar_lea.vmem [#allocation2], %s239
          %242 = vsyncadd %s237, 0
          %s243 = smul.addr %s18, 4
          %s244 = smul.addr %s243, 8
          %s245 = scalar_lea.hbm %s2, %s244
          %s246 = sshll.u32 %s245, 4
          %s247 = int_to_ptr.hbm [resolvable:$true] %s246
          %s248 = sshll.u32 %s240, 4
          %s249 = int_to_ptr.vmem [resolvable:$true] %s248
          %254 = dma.hbm_to_vmem [thread:$0]  %s247, 512, %s249, %s237, 128, 128, 8
        $region32: #{_tsa_forward.1} parent=19 // pred_fallthru
          _
        // Predicated region
        $region33: #{_tsa_forward.1} parent=19 // pred_check
          %p255 = pneg %p116
        $region34: #{_tsa_forward.1} parent=19 // pred_check_branch
          %257 = sbr.rel (%p255) target = $region36
        $region35: #{_tsa_forward.1} parent=19 // pred_region
          %s258 = sand.u32 %s18, 1
          %s259 = scalar_lea.sflag [#allocation5], %s258
          %s260 = sand.u32 %s106, 1
          %s261 = smul.addr %s260, 32
          %s262 = scalar_lea.vmem [#allocation4], %s261
          %264 = vsyncadd %s259, 0
          %s265 = smul.addr %s18, 4
          %s266 = smul.addr %s265, 8
          %s267 = scalar_lea.hbm %s3, %s266
          %s268 = sshll.u32 %s267, 4
          %s269 = int_to_ptr.hbm [resolvable:$true] %s268
          %s270 = sshll.u32 %s262, 4
          %s271 = int_to_ptr.vmem [resolvable:$true] %s270
          %276 = dma.hbm_to_vmem [thread:$0]  %s269, 512, %s271, %s259, 128, 128, 8
        $region36: #{_tsa_forward.1} parent=19 // pred_fallthru
          _
        // Predicated region
        $region37: #{_tsa_forward.1} parent=19 // pred_check
          %p277 = pneg %p142
        $region38: #{_tsa_forward.1} parent=19 // pred_check_branch
          %279 = sbr.rel (%p277) target = $region40
        $region39: #{_tsa_forward.1} parent=19 // pred_region
          %s280 = sand.u32 %s18, 1
          %s281 = scalar_lea.sflag [#allocation5], %s280
          %s282 = sand.u32 %s132, 1
          %s283 = smul.addr %s282, 32
          %s284 = scalar_lea.vmem [#allocation6], %s283
          %286 = vsyncadd %s281, 0
          %s287 = smul.addr %s18, 4
          %s288 = smul.addr %s287, 8
          %s289 = scalar_lea.hbm %s4, %s288
          %s290 = sshll.u32 %s289, 4
          %s291 = int_to_ptr.hbm [resolvable:$true] %s290
          %s292 = sshll.u32 %s284, 4
          %s293 = int_to_ptr.vmem [resolvable:$true] %s292
          %298 = dma.hbm_to_vmem [thread:$0]  %s291, 512, %s293, %s281, 128, 128, 8
        $region40: #{_tsa_forward.1} parent=19 // pred_fallthru
          _
      $region20: #{_tsa_forward.1} parent=5 // pred_fallthru
        _
      %p299 = scmp.le.s32.totalorder 1, %s18
      %p300 = scmp.lt.s32.totalorder %s18, 3
      %p301 = pnand %p299, %p300
      %p302 = pneg %p301
      // Predicated region
      $region41: #{_tsa_forward.1} parent=5 // pred_check
        _
      $region42: #{_tsa_forward.1} parent=5 // pred_check_branch
        %304 = sbr.rel (%p301) target = $region44
      $region43: #{_tsa_forward.1} parent=5 // pred_region
        %s305 = ssub.s32 %s18, 1
        %s306 = sand.u32 %s83, 1
        %s307 = scalar_lea.sflag [#allocation3], %s306
        %s308 = sand.u32 %s83, 1
        %s309 = smul.addr %s308, 32
        %s310 = scalar_lea.vmem [#allocation2], %s309
        // Predicated region
        $region45: #{_tsa_forward.1} parent=43 // pred_check
          %p311 = pneg %p96
        $region46: #{_tsa_forward.1} parent=43 // pred_check_branch
          %313 = sbr.rel (%p311) target = $region48
        $region47: #{_tsa_forward.1} parent=43 // pred_region
          %315 = dma.done %s307, 512
        $region48: #{_tsa_forward.1} parent=43 // pred_fallthru
          _
        %s316 = sand.u32 %s23, 1
        %s317 = scalar_lea.sflag [#allocation5], %s316
        %s318 = sand.u32 %s109, 1
        %s319 = smul.addr %s318, 32
        %s320 = scalar_lea.vmem [#allocation4], %s319
        // Predicated region
        $region49: #{_tsa_forward.1} parent=43 // pred_check
          %p321 = pneg %p122
        $region50: #{_tsa_forward.1} parent=43 // pred_check_branch
          %323 = sbr.rel (%p321) target = $region52
        $region51: #{_tsa_forward.1} parent=43 // pred_region
          %325 = dma.done %s317, 512
        $region52: #{_tsa_forward.1} parent=43 // pred_fallthru
          _
        %s326 = sand.u32 %s23, 1
        %s327 = scalar_lea.sflag [#allocation5], %s326
        %s328 = sand.u32 %s135, 1
        %s329 = smul.addr %s328, 32
        %s330 = scalar_lea.vmem [#allocation6], %s329
        // Predicated region
        $region53: #{_tsa_forward.1} parent=43 // pred_check
          %p331 = pneg %p148
        $region54: #{_tsa_forward.1} parent=43 // pred_check_branch
          %333 = sbr.rel (%p331) target = $region56
        $region55: #{_tsa_forward.1} parent=43 // pred_region
          %335 = dma.done %s327, 512
        $region56: #{_tsa_forward.1} parent=43 // pred_fallthru
          _
        %p336 = scmp.lt.s32.totalorder %s23, 1
        %s337 = scalar_select %p336, %s23, 1
        %s338 = smul.addr %s337, 4
        %s339 = smul.addr %s338, 4
        %s340 = scalar_lea.vmem %s0, %s339
        %p341 = pneg %p44
        %p342 = pneg %p41
        %p343 = scmp.lt.s32.totalorder %s23, 1
        %s344 = scalar_select %p343, %s23, 1
        %s345 = smul.addr %s344, 4
        %s346 = smul.addr %s345, 8
        %s347 = scalar_lea.vmem %s1, %s346
        %p348 = pneg %p70
        %p349 = pneg %p67
        %s350 = sand.u32 %s83, 1
        %s351 = scalar_lea.sflag [#allocation3], %s350
        %s352 = sand.u32 %s83, 1
        %s353 = smul.addr %s352, 32
        %s354 = scalar_lea.vmem [#allocation2], %s353
        %p355 = pneg %p96
        %p356 = pneg %p93
        %s357 = sand.u32 %s23, 1
        %s358 = scalar_lea.sflag [#allocation5], %s357
        %s359 = sand.u32 %s109, 1
        %s360 = smul.addr %s359, 32
        %s361 = scalar_lea.vmem [#allocation4], %s360
        %p362 = pneg %p122
        %p363 = pneg %p119
        %s364 = sand.u32 %s23, 1
        %s365 = scalar_lea.sflag [#allocation5], %s364
        %s366 = sand.u32 %s135, 1
        %s367 = smul.addr %s366, 32
        %s368 = scalar_lea.vmem [#allocation6], %s367
        %p369 = pneg %p148
        %p370 = pneg %p145
        %p371 = pneg %p169
        %p372 = pneg %p166
        %p373 = pneg %p195
        %p374 = pneg %p192
        %p375 = scmp.lt.s32.totalorder %s23, 1
        %s376 = scalar_select %p375, %s23, 1
        %s377 = smul.addr %s376, 8
        %s378 = scalar_lea.vmem %s6, %s377
        %p379 = scmp.lt.s32.totalorder %s23, 1
        %s380 = scalar_select %p379, %s23, 1
        %s381 = smul.addr %s380, 4
        %s382 = smul.addr %s381, 4
        %s383 = scalar_lea.vmem %s0, %s382
        %p384 = scmp.lt.s32.totalorder %s23, 1
        %s385 = scalar_select %p384, %s23, 1
        %s386 = smul.addr %s385, 4
        %s387 = smul.addr %s386, 8
        %s388 = scalar_lea.vmem %s1, %s387
        %p389 = scmp.lt.s32.totalorder %s23, 1
        %s390 = scalar_select %p389, %s23, 1
        %s391 = smul.addr %s390, 8
        %s392 = scalar_lea.vmem %s6, %s391
        %v394 = vlaneseq
        %v395 = vshrl.u32 %v394, 7
        %v396 = vlaneseq
        %v397 = vand.u32 %v396, 127
        %v398 = vld [vmem:[%s383] sm:$0xf]
        %v399 = vld [vmem:[%s383 + $0x4] sm:$0xf]
        %v400 = vld [vmem:[%s383 + $0x8] sm:$0xf]
        %v401 = vld [vmem:[%s383 + $0xc] sm:$0xf]
        %v402 = vunpack.c.l.bf16 %v398
        %v403 = vunpack.c.l.bf16 %v399
        %v404 = vunpack.c.l.bf16 %v400
        %v405 = vunpack.c.l.bf16 %v401
        %v406 = vld [vmem:[%s5] sm:$0xf]
        %v407 = vld [vmem:[%s5 + $0x4] sm:$0xf]
        %v408 = vld [vmem:[%s5 + $0x8] sm:$0xf]
        %v409 = vld [vmem:[%s5 + $0xc] sm:$0xf]
        %v414 = vunpack.c.l.b16 %v398
        %v415 = vunpack.c.l.b16 %v399
        %v416 = vunpack.c.l.b16 %v400
        %v417 = vunpack.c.l.b16 %v401
        %v418 = vpack.c.b16 %v415, %v414
        %v419 = vpack.c.b16 %v417, %v416
        %v424 = vunpack.c.l.b16 %v406
        %v425 = vunpack.c.l.b16 %v407
        %v426 = vunpack.c.l.b16 %v408
        %v427 = vunpack.c.l.b16 %v409
        %v428 = vpack.c.b16 %v425, %v424
        %v429 = vpack.c.b16 %v427, %v426
        %vm432 = vcmask 261120
        %v434 = vsel %vm432, %v418, 0
        %v437 = vsel %vm432, %v419, 0
        %439 = vmatpush.bf16.msra.mxu0 0
        %440 = vmatpush.bf16.msra.mxu0 0
        %441 = vmatpush.bf16.msra.mxu0 0
        %442 = vmatpush.bf16.msra.mxu0 0
        %443 = vmatpush.bf16.msra.mxu0 0
        %444 = vmatpush.bf16.msra.mxu0 0
        %445 = vmatpush.bf16.msra.mxu0 %v429
        %446 = vmatpush.bf16.msra.mxu0 %v428
        %447 = vmatmul.bf16.gmra.mxu0 %v434
        %v448 = vpop.f32.mrf.mxu0
        %v449 = vadd.f32 0.0, %v448
        %v450 = vpop.f32.mrf.mxu0
        %v451 = vadd.f32 0.0, %v450
        %452 = vmatmul.bf16.gmra.mxu0 %v437
        %v453 = vpop.f32.mrf.mxu0
        %v454 = vadd.f32 0.0, %v453
        %v455 = vpop.f32.mrf.mxu0
        %v456 = vadd.f32 0.0, %v455
        %457 = vdwg.mxu0
        %v458 = vpack.c.bf16 %v451, %v449
        %v459 = vpack.c.bf16 %v456, %v454
        %v461 = vsel %vm432, %v428, 0
        %v464 = vsel %vm432, %v429, 0
        %466 = vmatpush.bf16.msra.mxu0 0
        %467 = vmatpush.bf16.msra.mxu0 0
        %468 = vmatpush.bf16.msra.mxu0 0
        %469 = vmatpush.bf16.msra.mxu0 0
        %470 = vmatpush.bf16.msra.mxu0 0
        %471 = vmatpush.bf16.msra.mxu0 0
        %472 = vmatpush.bf16.msra.mxu0 %v459
        %473 = vmatpush.bf16.msra.mxu0 %v458
        %474 = vmatmul.bf16.gmra.mxu0 %v461
        %v475 = vpop.f32.mrf.mxu0
        %v476 = vadd.f32 0.0, %v475
        %v477 = vpop.f32.mrf.mxu0
        %v478 = vadd.f32 0.0, %v477
        %479 = vmatmul.bf16.gmra.mxu0 %v464
        %v480 = vpop.f32.mrf.mxu0
        %v481 = vadd.f32 0.0, %v480
        %v482 = vpop.f32.mrf.mxu0
        %v483 = vadd.f32 0.0, %v482
        %484 = vdwg.mxu0
        %v485 = vmul.f32 %v476, 0.0010405828
        %v486 = vmul.f32 %v478, 0.0010405828
        %v487 = vmul.f32 %v481, 0.0010405828
        %v488 = vmul.f32 %v483, 0.0010405828
        %v489 = vsub.f32 %v485, %v402
        %v490 = vsub.f32 %v486, %v403
        %v491 = vsub.f32 %v487, %v404
        %v492 = vsub.f32 %v488, %v405
        %v493 = vand.u32 2147483647, %v489
        %v494 = vand.u32 2147483647, %v490
        %v495 = vand.u32 2147483647, %v491
        %v496 = vand.u32 2147483647, %v492
        %v497 = vmul.f32 %v493, 5.0
        %v498 = vmul.f32 %v494, 5.0
        %v499 = vmul.f32 %v495, 5.0
        %v500 = vmul.f32 %v496, 5.0
        %v501 = vadd.f32 %v497, 1.0
        %v502 = vadd.f32 %v498, 1.0
        %v503 = vadd.f32 %v499, 1.0
        %v504 = vadd.f32 %v500, 1.0
        %v505 = vmul.f32 %v402, %v501
        %v506 = vmul.f32 %v403, %v502
        %v507 = vmul.f32 %v404, %v503
        %v508 = vmul.f32 %v405, %v504
        %v509 = vsel %vm432, %v505, 0.0
        %v510 = vsel %vm432, %v506, 0.0
        %v511 = vadd.f32 %v509, %v510
        %v512 = vsel %vm432, %v507, 0.0
        %v513 = vadd.f32 %v511, %v512
        %v514 = vsel %vm432, %v508, 0.0
        %v515 = vadd.f32 %v513, %v514
        %516 = vadd.xlane.f32.xlu0 %v515
        %v517 = vpop.xlane.xlu0 %516
        %v518 = vrot.slane %v517, 4
        %v519 = vadd.f32 %v517, %v518
        %v520 = vrot.slane %v519, 2
        %v521 = vadd.f32 %v519, %v520
        %v522 = vrot.slane %v521, 1
        %v523 = vadd.f32 %v521, %v522
        %s524 = vtos %v523
        %v525 = vstv %s524
        %v526 = vld [vmem:[%s388] sm:$0xff]
        %v527 = vld [vmem:[%s388 + $0x8] sm:$0xff]
        %v528 = vld [vmem:[%s388 + $0x10] sm:$0xff]
        %v529 = vld [vmem:[%s388 + $0x18] sm:$0xff]
        %v530 = vand.u32 2147483647, %v526
        %v531 = vand.u32 2147483647, %v527
        %v532 = vand.u32 2147483647, %v528
        %v533 = vand.u32 2147483647, %v529
        %v534 = vsub.f32 0.0, %v530
        %v535 = vsub.f32 0.0, %v531
        %v536 = vsub.f32 0.0, %v532
        %v537 = vsub.f32 0.0, %v533
        %v538 = vmul.f32 %v534, 1.442695
        %v539 = vpow.pop %v538
        %v540 = vmul.f32 %v535, 1.442695
        %v541 = vpow.pop %v540
        %v542 = vmul.f32 %v536, 1.442695
        %v543 = vpow.pop %v542
        %v544 = vmul.f32 %v537, 1.442695
        %v545 = vpow.pop %v544
        %v546 = vadd.f32 %v539, 1.0
        %v547 = vadd.f32 %v541, 1.0
        %v548 = vadd.f32 %v543, 1.0
        %v549 = vadd.f32 %v545, 1.0
        %v550 = vrcp.pop %v546
        %v551 = vmul.f32 %v546, %v550
        %v552 = vsub.f32 1.0, %v551
        %v553 = vmul.f32 %v550, %v552
        %v554 = vadd.f32 %v550, %v553
        %vm555 = vweird.f32 %v546
        %vm556 = vweird.f32 %v550
        %vm557 = vmor %vm555, %vm556
        %v558 = vsel %vm557, %v550, %v554
        %v559 = vand.u32 2147483647, %v546
        %vm560 = vcmp.eq.f32.partialorder %v559, 8.507059e+37
        %v561 = vand.u32 %v546, 2147483648
        %v562 = vor.u32 1.1754944e-38, %v561
        %v563 = vsel %vm560, %v562, %v558
        %v564 = vmul.f32 1.0, %v563
        %v565 = vrcp.pop %v547
        %v566 = vmul.f32 %v547, %v565
        %v567 = vsub.f32 1.0, %v566
        %v568 = vmul.f32 %v565, %v567
        %v569 = vadd.f32 %v565, %v568
        %vm570 = vweird.f32 %v547
        %vm571 = vweird.f32 %v565
        %vm572 = vmor %vm570, %vm571
        %v573 = vsel %vm572, %v565, %v569
        %v574 = vand.u32 2147483647, %v547
        %vm575 = vcmp.eq.f32.partialorder %v574, 8.507059e+37
        %v576 = vand.u32 %v547, 2147483648
        %v577 = vor.u32 1.1754944e-38, %v576
        %v578 = vsel %vm575, %v577, %v573
        %v579 = vmul.f32 1.0, %v578
        %v580 = vrcp.pop %v548
        %v581 = vmul.f32 %v548, %v580
        %v582 = vsub.f32 1.0, %v581
        %v583 = vmul.f32 %v580, %v582
        %v584 = vadd.f32 %v580, %v583
        %vm585 = vweird.f32 %v548
        %vm586 = vweird.f32 %v580
        %vm587 = vmor %vm585, %vm586
        %v588 = vsel %vm587, %v580, %v584
        %v589 = vand.u32 2147483647, %v548
        %vm590 = vcmp.eq.f32.partialorder %v589, 8.507059e+37
        %v591 = vand.u32 %v548, 2147483648
        %v592 = vor.u32 1.1754944e-38, %v591
        %v593 = vsel %vm590, %v592, %v588
        %v594 = vmul.f32 1.0, %v593
        %v595 = vrcp.pop %v549
        %v596 = vmul.f32 %v549, %v595
        %v597 = vsub.f32 1.0, %v596
        %v598 = vmul.f32 %v595, %v597
        %v599 = vadd.f32 %v595, %v598
        %vm600 = vweird.f32 %v549
        %vm601 = vweird.f32 %v595
        %vm602 = vmor %vm600, %vm601
        %v603 = vsel %vm602, %v595, %v599
        %v604 = vand.u32 2147483647, %v549
        %vm605 = vcmp.eq.f32.partialorder %v604, 8.507059e+37
        %v606 = vand.u32 %v549, 2147483648
        %v607 = vor.u32 1.1754944e-38, %v606
        %v608 = vsel %vm605, %v607, %v603
        %v609 = vmul.f32 1.0, %v608
        %vm610 = vcmp.ge.f32.partialorder %v526, 0.0
        %vm611 = vcmp.ge.f32.partialorder %v527, 0.0
        %vm612 = vcmp.ge.f32.partialorder %v528, 0.0
        %vm613 = vcmp.ge.f32.partialorder %v529, 0.0
        %v614 = vmul.f32 %v539, %v564
        %v615 = vmul.f32 %v541, %v579
        %v616 = vmul.f32 %v543, %v594
        %v617 = vmul.f32 %v545, %v609
        %v618 = vsel %vm610, %v564, %v614
        %v619 = vsel %vm611, %v579, %v615
        %v620 = vsel %vm612, %v594, %v616
        %v621 = vsel %vm613, %v609, %v617
        %vm622 = vcmp.gt.f32.partialorder %v546, 1.0
        %vm623 = vcmp.gt.f32.partialorder %v547, 1.0
        %vm624 = vcmp.gt.f32.partialorder %v548, 1.0
        %vm625 = vcmp.gt.f32.partialorder %v549, 1.0
        %v626 = vlog2.pop %v546
        %v627 = vmul.f32 %v626, 0.6931472
        %v628 = vlog2.pop %v547
        %v629 = vmul.f32 %v628, 0.6931472
        %v630 = vlog2.pop %v548
        %v631 = vmul.f32 %v630, 0.6931472
        %v632 = vlog2.pop %v549
        %v633 = vmul.f32 %v632, 0.6931472
        %v634 = vsel %vm622, %v627, %v539
        %v635 = vsel %vm623, %v629, %v541
        %v636 = vsel %vm624, %v631, %v543
        %v637 = vsel %vm625, %v633, %v545
        %v638 = vmax.f32 %v526, 0.0
        %v639 = vmax.f32 %v527, 0.0
        %v640 = vmax.f32 %v528, 0.0
        %v641 = vmax.f32 %v529, 0.0
        %v642 = vmul.f32 %v526, %v402
        %v643 = vmul.f32 %v527, %v403
        %v644 = vmul.f32 %v528, %v404
        %v645 = vmul.f32 %v529, %v405
        %v646 = vsub.f32 %v638, %v642
        %v647 = vsub.f32 %v639, %v643
        %v648 = vsub.f32 %v640, %v644
        %v649 = vsub.f32 %v641, %v645
        %v650 = vadd.f32 %v646, %v634
        %v651 = vadd.f32 %v647, %v635
        %v652 = vadd.f32 %v648, %v636
        %v653 = vadd.f32 %v649, %v637
        %v654 = vsel %vm432, %v650, 0.0
        %v655 = vsel %vm432, %v651, 0.0
        %v656 = vadd.f32 %v654, %v655
        %v657 = vsel %vm432, %v652, 0.0
        %v658 = vadd.f32 %v656, %v657
        %v659 = vsel %vm432, %v653, 0.0
        %v660 = vadd.f32 %v658, %v659
        %661 = vadd.xlane.f32.xlu0 %v660
        %v662 = vpop.xlane.xlu0 %661
        %v663 = vrot.slane %v662, 4
        %v664 = vadd.f32 %v662, %v663
        %v665 = vrot.slane %v664, 2
        %v666 = vadd.f32 %v664, %v665
        %v667 = vrot.slane %v666, 1
        %v668 = vadd.f32 %v666, %v667
        %s669 = vtos %v668
        %v670 = vmul.f32 %v618, %v505
        %v671 = vmul.f32 %v619, %v506
        %v672 = vmul.f32 %v620, %v507
        %v673 = vmul.f32 %v621, %v508
        %v674 = vsel %vm432, %v670, 0.0
        %v675 = vsel %vm432, %v671, 0.0
        %v676 = vadd.f32 %v674, %v675
        %v677 = vsel %vm432, %v672, 0.0
        %v678 = vadd.f32 %v676, %v677
        %v679 = vsel %vm432, %v673, 0.0
        %v680 = vadd.f32 %v678, %v679
        %681 = vadd.xlane.f32.xlu0 %v680
        %v682 = vpop.xlane.xlu0 %681
        %v683 = vrot.slane %v682, 4
        %v684 = vadd.f32 %v682, %v683
        %v685 = vrot.slane %v684, 2
        %v686 = vadd.f32 %v684, %v685
        %v687 = vrot.slane %v686, 1
        %v688 = vadd.f32 %v686, %v687
        %s689 = vtos %v688
        %v690 = vmul.f32 %v618, %v501
        %v691 = vmul.f32 %v619, %v502
        %v692 = vmul.f32 %v620, %v503
        %v693 = vmul.f32 %v621, %v504
        %v694 = vsel %vm432, %v690, 0.0
        %v695 = vsel %vm432, %v691, 0.0
        %v696 = vadd.f32 %v694, %v695
        %v697 = vsel %vm432, %v692, 0.0
        %v698 = vadd.f32 %v696, %v697
        %v699 = vsel %vm432, %v693, 0.0
        %v700 = vadd.f32 %v698, %v699
        %701 = vadd.xlane.f32.xlu0 %v700
        %v702 = vpop.xlane.xlu0 %701
        %v703 = vrot.slane %v702, 4
        %v704 = vadd.f32 %v702, %v703
        %v705 = vrot.slane %v704, 2
        %v706 = vadd.f32 %v704, %v705
        %v707 = vrot.slane %v706, 1
        %v708 = vadd.f32 %v706, %v707
        %s709 = vtos %v708
        %v710 = vstv %s709
        %v711 = vadd.f32 %v710, %v525
        %vm712 = vcmp.eq.s32.totalorder %v397, 0
        %vm713 = vcmp.eq.s32.totalorder %v395, 0
        %vm714 = vmand %vm712, %vm713
        %v715 = vstv %s669
        %v716 = vsel %vm714, %v715, 0.0
        %v717 = vadd.f32 %v716, 0.0
        %vm718 = vcmp.eq.s32.totalorder %v395, 1
        %vm719 = vmand %vm712, %vm718
        %v720 = vstv %s689
        %v721 = vsel %vm719, %v720, 0.0
        %v722 = vadd.f32 %v717, %v721
        %vm723 = vcmp.eq.s32.totalorder %v395, 2
        %vm724 = vmand %vm712, %vm723
        %v725 = vsel %vm724, %v711, 0.0
        %v726 = vadd.f32 %v722, %v725
        %v727 = vld [vmem:[%s310] sm:$0xff]
        %v728 = vld [vmem:[%s310 + $0x8] sm:$0xff]
        %v729 = vld [vmem:[%s310 + $0x10] sm:$0xff]
        %v730 = vld [vmem:[%s310 + $0x18] sm:$0xff]
        %v731 = vand.u32 2147483647, %v727
        %v732 = vand.u32 2147483647, %v728
        %v733 = vand.u32 2147483647, %v729
        %v734 = vand.u32 2147483647, %v730
        %v735 = vsub.f32 0.0, %v731
        %v736 = vsub.f32 0.0, %v732
        %v737 = vsub.f32 0.0, %v733
        %v738 = vsub.f32 0.0, %v734
        %v739 = vmul.f32 %v735, 1.442695
        %v740 = vpow.pop %v739
        %v741 = vmul.f32 %v736, 1.442695
        %v742 = vpow.pop %v741
        %v743 = vmul.f32 %v737, 1.442695
        %v744 = vpow.pop %v743
        %v745 = vmul.f32 %v738, 1.442695
        %v746 = vpow.pop %v745
        %v747 = vadd.f32 %v740, 1.0
        %v748 = vadd.f32 %v742, 1.0
        %v749 = vadd.f32 %v744, 1.0
        %v750 = vadd.f32 %v746, 1.0
        %v751 = vrcp.pop %v747
        %v752 = vmul.f32 %v747, %v751
        %v753 = vsub.f32 1.0, %v752
        %v754 = vmul.f32 %v751, %v753
        %v755 = vadd.f32 %v751, %v754
        %vm756 = vweird.f32 %v747
        %vm757 = vweird.f32 %v751
        %vm758 = vmor %vm756, %vm757
        %v759 = vsel %vm758, %v751, %v755
        %v760 = vand.u32 2147483647, %v747
        %vm761 = vcmp.eq.f32.partialorder %v760, 8.507059e+37
        %v762 = vand.u32 %v747, 2147483648
        %v763 = vor.u32 1.1754944e-38, %v762
        %v764 = vsel %vm761, %v763, %v759
        %v765 = vmul.f32 1.0, %v764
        %v766 = vrcp.pop %v748
        %v767 = vmul.f32 %v748, %v766
        %v768 = vsub.f32 1.0, %v767
        %v769 = vmul.f32 %v766, %v768
        %v770 = vadd.f32 %v766, %v769
        %vm771 = vweird.f32 %v748
        %vm772 = vweird.f32 %v766
        %vm773 = vmor %vm771, %vm772
        %v774 = vsel %vm773, %v766, %v770
        %v775 = vand.u32 2147483647, %v748
        %vm776 = vcmp.eq.f32.partialorder %v775, 8.507059e+37
        %v777 = vand.u32 %v748, 2147483648
        %v778 = vor.u32 1.1754944e-38, %v777
        %v779 = vsel %vm776, %v778, %v774
        %v780 = vmul.f32 1.0, %v779
        %v781 = vrcp.pop %v749
        %v782 = vmul.f32 %v749, %v781
        %v783 = vsub.f32 1.0, %v782
        %v784 = vmul.f32 %v781, %v783
        %v785 = vadd.f32 %v781, %v784
        %vm786 = vweird.f32 %v749
        %vm787 = vweird.f32 %v781
        %vm788 = vmor %vm786, %vm787
        %v789 = vsel %vm788, %v781, %v785
        %v790 = vand.u32 2147483647, %v749
        %vm791 = vcmp.eq.f32.partialorder %v790, 8.507059e+37
        %v792 = vand.u32 %v749, 2147483648
        %v793 = vor.u32 1.1754944e-38, %v792
        %v794 = vsel %vm791, %v793, %v789
        %v795 = vmul.f32 1.0, %v794
        %v796 = vrcp.pop %v750
        %v797 = vmul.f32 %v750, %v796
        %v798 = vsub.f32 1.0, %v797
        %v799 = vmul.f32 %v796, %v798
        %v800 = vadd.f32 %v796, %v799
        %vm801 = vweird.f32 %v750
        %vm802 = vweird.f32 %v796
        %vm803 = vmor %vm801, %vm802
        %v804 = vsel %vm803, %v796, %v800
        %v805 = vand.u32 2147483647, %v750
        %vm806 = vcmp.eq.f32.partialorder %v805, 8.507059e+37
        %v807 = vand.u32 %v750, 2147483648
        %v808 = vor.u32 1.1754944e-38, %v807
        %v809 = vsel %vm806, %v808, %v804
        %v810 = vmul.f32 1.0, %v809
        %vm811 = vcmp.ge.f32.partialorder %v727, 0.0
        %vm812 = vcmp.ge.f32.partialorder %v728, 0.0
        %vm813 = vcmp.ge.f32.partialorder %v729, 0.0
        %vm814 = vcmp.ge.f32.partialorder %v730, 0.0
        %v815 = vmul.f32 %v740, %v765
        %v816 = vmul.f32 %v742, %v780
        %v817 = vmul.f32 %v744, %v795
        %v818 = vmul.f32 %v746, %v810
        %v819 = vsel %vm811, %v765, %v815
        %v820 = vsel %vm812, %v780, %v816
        %v821 = vsel %vm813, %v795, %v817
        %v822 = vsel %vm814, %v810, %v818
        %vm823 = vcmp.gt.f32.partialorder %v747, 1.0
        %vm824 = vcmp.gt.f32.partialorder %v748, 1.0
        %vm825 = vcmp.gt.f32.partialorder %v749, 1.0
        %vm826 = vcmp.gt.f32.partialorder %v750, 1.0
        %v827 = vlog2.pop %v747
        %v828 = vmul.f32 %v827, 0.6931472
        %v829 = vlog2.pop %v748
        %v830 = vmul.f32 %v829, 0.6931472
        %v831 = vlog2.pop %v749
        %v832 = vmul.f32 %v831, 0.6931472
        %v833 = vlog2.pop %v750
        %v834 = vmul.f32 %v833, 0.6931472
        %v835 = vsel %vm823, %v828, %v740
        %v836 = vsel %vm824, %v830, %v742
        %v837 = vsel %vm825, %v832, %v744
        %v838 = vsel %vm826, %v834, %v746
        %v839 = vmax.f32 %v727, 0.0
        %v840 = vmax.f32 %v728, 0.0
        %v841 = vmax.f32 %v729, 0.0
        %v842 = vmax.f32 %v730, 0.0
        %v843 = vmul.f32 %v727, %v402
        %v844 = vmul.f32 %v728, %v403
        %v845 = vmul.f32 %v729, %v404
        %v846 = vmul.f32 %v730, %v405
        %v847 = vsub.f32 %v839, %v843
        %v848 = vsub.f32 %v840, %v844
        %v849 = vsub.f32 %v841, %v845
        %v850 = vsub.f32 %v842, %v846
        %v851 = vadd.f32 %v847, %v835
        %v852 = vadd.f32 %v848, %v836
        %v853 = vadd.f32 %v849, %v837
        %v854 = vadd.f32 %v850, %v838
        %v855 = vsel %vm432, %v851, 0.0
        %v856 = vsel %vm432, %v852, 0.0
        %v857 = vadd.f32 %v855, %v856
        %v858 = vsel %vm432, %v853, 0.0
        %v859 = vadd.f32 %v857, %v858
        %v860 = vsel %vm432, %v854, 0.0
        %v861 = vadd.f32 %v859, %v860
        %862 = vadd.xlane.f32.xlu0 %v861
        %v863 = vpop.xlane.xlu0 %862
        %v864 = vrot.slane %v863, 4
        %v865 = vadd.f32 %v863, %v864
        %v866 = vrot.slane %v865, 2
        %v867 = vadd.f32 %v865, %v866
        %v868 = vrot.slane %v867, 1
        %v869 = vadd.f32 %v867, %v868
        %s870 = vtos %v869
        %v871 = vmul.f32 %v819, %v505
        %v872 = vmul.f32 %v820, %v506
        %v873 = vmul.f32 %v821, %v507
        %v874 = vmul.f32 %v822, %v508
        %v875 = vsel %vm432, %v871, 0.0
        %v876 = vsel %vm432, %v872, 0.0
        %v877 = vadd.f32 %v875, %v876
        %v878 = vsel %vm432, %v873, 0.0
        %v879 = vadd.f32 %v877, %v878
        %v880 = vsel %vm432, %v874, 0.0
        %v881 = vadd.f32 %v879, %v880
        %882 = vadd.xlane.f32.xlu0 %v881
        %v883 = vpop.xlane.xlu0 %882
        %v884 = vrot.slane %v883, 4
        %v885 = vadd.f32 %v883, %v884
        %v886 = vrot.slane %v885, 2
        %v887 = vadd.f32 %v885, %v886
        %v888 = vrot.slane %v887, 1
        %v889 = vadd.f32 %v887, %v888
        %s890 = vtos %v889
        %v891 = vmul.f32 %v819, %v501
        %v892 = vmul.f32 %v820, %v502
        %v893 = vmul.f32 %v821, %v503
        %v894 = vmul.f32 %v822, %v504
        %v895 = vsel %vm432, %v891, 0.0
        %v896 = vsel %vm432, %v892, 0.0
        %v897 = vadd.f32 %v895, %v896
        %v898 = vsel %vm432, %v893, 0.0
        %v899 = vadd.f32 %v897, %v898
        %v900 = vsel %vm432, %v894, 0.0
        %v901 = vadd.f32 %v899, %v900
        %902 = vadd.xlane.f32.xlu0 %v901
        %v903 = vpop.xlane.xlu0 %902
        %v904 = vrot.slane %v903, 4
        %v905 = vadd.f32 %v903, %v904
        %v906 = vrot.slane %v905, 2
        %v907 = vadd.f32 %v905, %v906
        %v908 = vrot.slane %v907, 1
        %v909 = vadd.f32 %v907, %v908
        %s910 = vtos %v909
        %v911 = vstv %s910
        %v912 = vadd.f32 %v911, %v525
        %vm913 = vcmp.eq.s32.totalorder %v397, 1
        %vm914 = vmand %vm913, %vm713
        %v915 = vstv %s870
        %v916 = vsel %vm914, %v915, 0.0
        %v917 = vadd.f32 %v726, %v916
        %vm918 = vmand %vm913, %vm718
        %v919 = vstv %s890
        %v920 = vsel %vm918, %v919, 0.0
        %v921 = vadd.f32 %v917, %v920
        %vm922 = vmand %vm913, %vm723
        %v923 = vsel %vm922, %v912, 0.0
        %v924 = vadd.f32 %v921, %v923
        %v925 = vld [vmem:[%s320] sm:$0xff]
        %v926 = vld [vmem:[%s320 + $0x8] sm:$0xff]
        %v927 = vld [vmem:[%s320 + $0x10] sm:$0xff]
        %v928 = vld [vmem:[%s320 + $0x18] sm:$0xff]
        %v929 = vand.u32 2147483647, %v925
        %v930 = vand.u32 2147483647, %v926
        %v931 = vand.u32 2147483647, %v927
        %v932 = vand.u32 2147483647, %v928
        %v933 = vsub.f32 0.0, %v929
        %v934 = vsub.f32 0.0, %v930
        %v935 = vsub.f32 0.0, %v931
        %v936 = vsub.f32 0.0, %v932
        %v937 = vmul.f32 %v933, 1.442695
        %v938 = vpow.pop %v937
        %v939 = vmul.f32 %v934, 1.442695
        %v940 = vpow.pop %v939
        %v941 = vmul.f32 %v935, 1.442695
        %v942 = vpow.pop %v941
        %v943 = vmul.f32 %v936, 1.442695
        %v944 = vpow.pop %v943
        %v945 = vadd.f32 %v938, 1.0
        %v946 = vadd.f32 %v940, 1.0
        %v947 = vadd.f32 %v942, 1.0
        %v948 = vadd.f32 %v944, 1.0
        %v949 = vrcp.pop %v945
        %v950 = vmul.f32 %v945, %v949
        %v951 = vsub.f32 1.0, %v950
        %v952 = vmul.f32 %v949, %v951
        %v953 = vadd.f32 %v949, %v952
        %vm954 = vweird.f32 %v945
        %vm955 = vweird.f32 %v949
        %vm956 = vmor %vm954, %vm955
        %v957 = vsel %vm956, %v949, %v953
        %v958 = vand.u32 2147483647, %v945
        %vm959 = vcmp.eq.f32.partialorder %v958, 8.507059e+37
        %v960 = vand.u32 %v945, 2147483648
        %v961 = vor.u32 1.1754944e-38, %v960
        %v962 = vsel %vm959, %v961, %v957
        %v963 = vmul.f32 1.0, %v962
        %v964 = vrcp.pop %v946
        %v965 = vmul.f32 %v946, %v964
        %v966 = vsub.f32 1.0, %v965
        %v967 = vmul.f32 %v964, %v966
        %v968 = vadd.f32 %v964, %v967
        %vm969 = vweird.f32 %v946
        %vm970 = vweird.f32 %v964
        %vm971 = vmor %vm969, %vm970
        %v972 = vsel %vm971, %v964, %v968
        %v973 = vand.u32 2147483647, %v946
        %vm974 = vcmp.eq.f32.partialorder %v973, 8.507059e+37
        %v975 = vand.u32 %v946, 2147483648
        %v976 = vor.u32 1.1754944e-38, %v975
        %v977 = vsel %vm974, %v976, %v972
        %v978 = vmul.f32 1.0, %v977
        %v979 = vrcp.pop %v947
        %v980 = vmul.f32 %v947, %v979
        %v981 = vsub.f32 1.0, %v980
        %v982 = vmul.f32 %v979, %v981
        %v983 = vadd.f32 %v979, %v982
        %vm984 = vweird.f32 %v947
        %vm985 = vweird.f32 %v979
        %vm986 = vmor %vm984, %vm985
        %v987 = vsel %vm986, %v979, %v983
        %v988 = vand.u32 2147483647, %v947
        %vm989 = vcmp.eq.f32.partialorder %v988, 8.507059e+37
        %v990 = vand.u32 %v947, 2147483648
        %v991 = vor.u32 1.1754944e-38, %v990
        %v992 = vsel %vm989, %v991, %v987
        %v993 = vmul.f32 1.0, %v992
        %v994 = vrcp.pop %v948
        %v995 = vmul.f32 %v948, %v994
        %v996 = vsub.f32 1.0, %v995
        %v997 = vmul.f32 %v994, %v996
        %v998 = vadd.f32 %v994, %v997
        %vm999 = vweird.f32 %v948
        %vm1000 = vweird.f32 %v994
        %vm1001 = vmor %vm999, %vm1000
        %v1002 = vsel %vm1001, %v994, %v998
        %v1003 = vand.u32 2147483647, %v948
        %vm1004 = vcmp.eq.f32.partialorder %v1003, 8.507059e+37
        %v1005 = vand.u32 %v948, 2147483648
        %v1006 = vor.u32 1.1754944e-38, %v1005
        %v1007 = vsel %vm1004, %v1006, %v1002
        %v1008 = vmul.f32 1.0, %v1007
        %vm1009 = vcmp.ge.f32.partialorder %v925, 0.0
        %vm1010 = vcmp.ge.f32.partialorder %v926, 0.0
        %vm1011 = vcmp.ge.f32.partialorder %v927, 0.0
        %vm1012 = vcmp.ge.f32.partialorder %v928, 0.0
        %v1013 = vmul.f32 %v938, %v963
        %v1014 = vmul.f32 %v940, %v978
        %v1015 = vmul.f32 %v942, %v993
        %v1016 = vmul.f32 %v944, %v1008
        %v1017 = vsel %vm1009, %v963, %v1013
        %v1018 = vsel %vm1010, %v978, %v1014
        %v1019 = vsel %vm1011, %v993, %v1015
        %v1020 = vsel %vm1012, %v1008, %v1016
        %vm1021 = vcmp.gt.f32.partialorder %v945, 1.0
        %vm1022 = vcmp.gt.f32.partialorder %v946, 1.0
        %vm1023 = vcmp.gt.f32.partialorder %v947, 1.0
        %vm1024 = vcmp.gt.f32.partialorder %v948, 1.0
        %v1025 = vlog2.pop %v945
        %v1026 = vmul.f32 %v1025, 0.6931472
        %v1027 = vlog2.pop %v946
        %v1028 = vmul.f32 %v1027, 0.6931472
        %v1029 = vlog2.pop %v947
        %v1030 = vmul.f32 %v1029, 0.6931472
        %v1031 = vlog2.pop %v948
        %v1032 = vmul.f32 %v1031, 0.6931472
        %v1033 = vsel %vm1021, %v1026, %v938
        %v1034 = vsel %vm1022, %v1028, %v940
        %v1035 = vsel %vm1023, %v1030, %v942
        %v1036 = vsel %vm1024, %v1032, %v944
        %v1037 = vmax.f32 %v925, 0.0
        %v1038 = vmax.f32 %v926, 0.0
        %v1039 = vmax.f32 %v927, 0.0
        %v1040 = vmax.f32 %v928, 0.0
        %v1041 = vmul.f32 %v925, %v402
        %v1042 = vmul.f32 %v926, %v403
        %v1043 = vmul.f32 %v927, %v404
        %v1044 = vmul.f32 %v928, %v405
        %v1045 = vsub.f32 %v1037, %v1041
        %v1046 = vsub.f32 %v1038, %v1042
        %v1047 = vsub.f32 %v1039, %v1043
        %v1048 = vsub.f32 %v1040, %v1044
        %v1049 = vadd.f32 %v1045, %v1033
        %v1050 = vadd.f32 %v1046, %v1034
        %v1051 = vadd.f32 %v1047, %v1035
        %v1052 = vadd.f32 %v1048, %v1036
        %v1053 = vsel %vm432, %v1049, 0.0
        %v1054 = vsel %vm432, %v1050, 0.0
        %v1055 = vadd.f32 %v1053, %v1054
        %v1056 = vsel %vm432, %v1051, 0.0
        %v1057 = vadd.f32 %v1055, %v1056
        %v1058 = vsel %vm432, %v1052, 0.0
        %v1059 = vadd.f32 %v1057, %v1058
        %1060 = vadd.xlane.f32.xlu0 %v1059
        %v1061 = vpop.xlane.xlu0 %1060
        %v1062 = vrot.slane %v1061, 4
        %v1063 = vadd.f32 %v1061, %v1062
        %v1064 = vrot.slane %v1063, 2
        %v1065 = vadd.f32 %v1063, %v1064
        %v1066 = vrot.slane %v1065, 1
        %v1067 = vadd.f32 %v1065, %v1066
        %s1068 = vtos %v1067
        %v1069 = vmul.f32 %v1017, %v505
        %v1070 = vmul.f32 %v1018, %v506
        %v1071 = vmul.f32 %v1019, %v507
        %v1072 = vmul.f32 %v1020, %v508
        %v1073 = vsel %vm432, %v1069, 0.0
        %v1074 = vsel %vm432, %v1070, 0.0
        %v1075 = vadd.f32 %v1073, %v1074
        %v1076 = vsel %vm432, %v1071, 0.0
        %v1077 = vadd.f32 %v1075, %v1076
        %v1078 = vsel %vm432, %v1072, 0.0
        %v1079 = vadd.f32 %v1077, %v1078
        %1080 = vadd.xlane.f32.xlu0 %v1079
        %v1081 = vpop.xlane.xlu0 %1080
        %v1082 = vrot.slane %v1081, 4
        %v1083 = vadd.f32 %v1081, %v1082
        %v1084 = vrot.slane %v1083, 2
        %v1085 = vadd.f32 %v1083, %v1084
        %v1086 = vrot.slane %v1085, 1
        %v1087 = vadd.f32 %v1085, %v1086
        %s1088 = vtos %v1087
        %v1089 = vmul.f32 %v1017, %v501
        %v1090 = vmul.f32 %v1018, %v502
        %v1091 = vmul.f32 %v1019, %v503
        %v1092 = vmul.f32 %v1020, %v504
        %v1093 = vsel %vm432, %v1089, 0.0
        %v1094 = vsel %vm432, %v1090, 0.0
        %v1095 = vadd.f32 %v1093, %v1094
        %v1096 = vsel %vm432, %v1091, 0.0
        %v1097 = vadd.f32 %v1095, %v1096
        %v1098 = vsel %vm432, %v1092, 0.0
        %v1099 = vadd.f32 %v1097, %v1098
        %1100 = vadd.xlane.f32.xlu0 %v1099
        %v1101 = vpop.xlane.xlu0 %1100
        %v1102 = vrot.slane %v1101, 4
        %v1103 = vadd.f32 %v1101, %v1102
        %v1104 = vrot.slane %v1103, 2
        %v1105 = vadd.f32 %v1103, %v1104
        %v1106 = vrot.slane %v1105, 1
        %v1107 = vadd.f32 %v1105, %v1106
        %s1108 = vtos %v1107
        %v1109 = vstv %s1108
        %v1110 = vadd.f32 %v1109, %v525
        %vm1111 = vcmp.eq.s32.totalorder %v397, 2
        %vm1112 = vmand %vm1111, %vm713
        %v1113 = vstv %s1068
        %v1114 = vsel %vm1112, %v1113, 0.0
        %v1115 = vadd.f32 %v924, %v1114
        %vm1116 = vmand %vm1111, %vm718
        %v1117 = vstv %s1088
        %v1118 = vsel %vm1116, %v1117, 0.0
        %v1119 = vadd.f32 %v1115, %v1118
        %vm1120 = vmand %vm1111, %vm723
        %v1121 = vsel %vm1120, %v1110, 0.0
        %v1122 = vadd.f32 %v1119, %v1121
        %v1123 = vld [vmem:[%s330] sm:$0xff]
        %v1124 = vld [vmem:[%s330 + $0x8] sm:$0xff]
        %v1125 = vld [vmem:[%s330 + $0x10] sm:$0xff]
        %v1126 = vld [vmem:[%s330 + $0x18] sm:$0xff]
        %v1127 = vand.u32 2147483647, %v1123
        %v1128 = vand.u32 2147483647, %v1124
        %v1129 = vand.u32 2147483647, %v1125
        %v1130 = vand.u32 2147483647, %v1126
        %v1131 = vsub.f32 0.0, %v1127
        %v1132 = vsub.f32 0.0, %v1128
        %v1133 = vsub.f32 0.0, %v1129
        %v1134 = vsub.f32 0.0, %v1130
        %v1135 = vmul.f32 %v1131, 1.442695
        %v1136 = vpow.pop %v1135
        %v1137 = vmul.f32 %v1132, 1.442695
        %v1138 = vpow.pop %v1137
        %v1139 = vmul.f32 %v1133, 1.442695
        %v1140 = vpow.pop %v1139
        %v1141 = vmul.f32 %v1134, 1.442695
        %v1142 = vpow.pop %v1141
        %v1143 = vadd.f32 %v1136, 1.0
        %v1144 = vadd.f32 %v1138, 1.0
        %v1145 = vadd.f32 %v1140, 1.0
        %v1146 = vadd.f32 %v1142, 1.0
        %v1147 = vrcp.pop %v1143
        %v1148 = vmul.f32 %v1143, %v1147
        %v1149 = vsub.f32 1.0, %v1148
        %v1150 = vmul.f32 %v1147, %v1149
        %v1151 = vadd.f32 %v1147, %v1150
        %vm1152 = vweird.f32 %v1143
        %vm1153 = vweird.f32 %v1147
        %vm1154 = vmor %vm1152, %vm1153
        %v1155 = vsel %vm1154, %v1147, %v1151
        %v1156 = vand.u32 2147483647, %v1143
        %vm1157 = vcmp.eq.f32.partialorder %v1156, 8.507059e+37
        %v1158 = vand.u32 %v1143, 2147483648
        %v1159 = vor.u32 1.1754944e-38, %v1158
        %v1160 = vsel %vm1157, %v1159, %v1155
        %v1161 = vmul.f32 1.0, %v1160
        %v1162 = vrcp.pop %v1144
        %v1163 = vmul.f32 %v1144, %v1162
        %v1164 = vsub.f32 1.0, %v1163
        %v1165 = vmul.f32 %v1162, %v1164
        %v1166 = vadd.f32 %v1162, %v1165
        %vm1167 = vweird.f32 %v1144
        %vm1168 = vweird.f32 %v1162
        %vm1169 = vmor %vm1167, %vm1168
        %v1170 = vsel %vm1169, %v1162, %v1166
        %v1171 = vand.u32 2147483647, %v1144
        %vm1172 = vcmp.eq.f32.partialorder %v1171, 8.507059e+37
        %v1173 = vand.u32 %v1144, 2147483648
        %v1174 = vor.u32 1.1754944e-38, %v1173
        %v1175 = vsel %vm1172, %v1174, %v1170
        %v1176 = vmul.f32 1.0, %v1175
        %v1177 = vrcp.pop %v1145
        %v1178 = vmul.f32 %v1145, %v1177
        %v1179 = vsub.f32 1.0, %v1178
        %v1180 = vmul.f32 %v1177, %v1179
        %v1181 = vadd.f32 %v1177, %v1180
        %vm1182 = vweird.f32 %v1145
        %vm1183 = vweird.f32 %v1177
        %vm1184 = vmor %vm1182, %vm1183
        %v1185 = vsel %vm1184, %v1177, %v1181
        %v1186 = vand.u32 2147483647, %v1145
        %vm1187 = vcmp.eq.f32.partialorder %v1186, 8.507059e+37
        %v1188 = vand.u32 %v1145, 2147483648
        %v1189 = vor.u32 1.1754944e-38, %v1188
        %v1190 = vsel %vm1187, %v1189, %v1185
        %v1191 = vmul.f32 1.0, %v1190
        %v1192 = vrcp.pop %v1146
        %v1193 = vmul.f32 %v1146, %v1192
        %v1194 = vsub.f32 1.0, %v1193
        %v1195 = vmul.f32 %v1192, %v1194
        %v1196 = vadd.f32 %v1192, %v1195
        %vm1197 = vweird.f32 %v1146
        %vm1198 = vweird.f32 %v1192
        %vm1199 = vmor %vm1197, %vm1198
        %v1200 = vsel %vm1199, %v1192, %v1196
        %v1201 = vand.u32 2147483647, %v1146
        %vm1202 = vcmp.eq.f32.partialorder %v1201, 8.507059e+37
        %v1203 = vand.u32 %v1146, 2147483648
        %v1204 = vor.u32 1.1754944e-38, %v1203
        %v1205 = vsel %vm1202, %v1204, %v1200
        %v1206 = vmul.f32 1.0, %v1205
        %vm1207 = vcmp.ge.f32.partialorder %v1123, 0.0
        %vm1208 = vcmp.ge.f32.partialorder %v1124, 0.0
        %vm1209 = vcmp.ge.f32.partialorder %v1125, 0.0
        %vm1210 = vcmp.ge.f32.partialorder %v1126, 0.0
        %v1211 = vmul.f32 %v1136, %v1161
        %v1212 = vmul.f32 %v1138, %v1176
        %v1213 = vmul.f32 %v1140, %v1191
        %v1214 = vmul.f32 %v1142, %v1206
        %v1215 = vsel %vm1207, %v1161, %v1211
        %v1216 = vsel %vm1208, %v1176, %v1212
        %v1217 = vsel %vm1209, %v1191, %v1213
        %v1218 = vsel %vm1210, %v1206, %v1214
        %vm1219 = vcmp.gt.f32.partialorder %v1143, 1.0
        %vm1220 = vcmp.gt.f32.partialorder %v1144, 1.0
        %vm1221 = vcmp.gt.f32.partialorder %v1145, 1.0
        %vm1222 = vcmp.gt.f32.partialorder %v1146, 1.0
        %v1223 = vlog2.pop %v1143
        %v1224 = vmul.f32 %v1223, 0.6931472
        %v1225 = vlog2.pop %v1144
        %v1226 = vmul.f32 %v1225, 0.6931472
        %v1227 = vlog2.pop %v1145
        %v1228 = vmul.f32 %v1227, 0.6931472
        %v1229 = vlog2.pop %v1146
        %v1230 = vmul.f32 %v1229, 0.6931472
        %v1231 = vsel %vm1219, %v1224, %v1136
        %v1232 = vsel %vm1220, %v1226, %v1138
        %v1233 = vsel %vm1221, %v1228, %v1140
        %v1234 = vsel %vm1222, %v1230, %v1142
        %v1235 = vmax.f32 %v1123, 0.0
        %v1236 = vmax.f32 %v1124, 0.0
        %v1237 = vmax.f32 %v1125, 0.0
        %v1238 = vmax.f32 %v1126, 0.0
        %v1239 = vmul.f32 %v1123, %v402
        %v1240 = vmul.f32 %v1124, %v403
        %v1241 = vmul.f32 %v1125, %v404
        %v1242 = vmul.f32 %v1126, %v405
        %v1243 = vsub.f32 %v1235, %v1239
        %v1244 = vsub.f32 %v1236, %v1240
        %v1245 = vsub.f32 %v1237, %v1241
        %v1246 = vsub.f32 %v1238, %v1242
        %v1247 = vadd.f32 %v1243, %v1231
        %v1248 = vadd.f32 %v1244, %v1232
        %v1249 = vadd.f32 %v1245, %v1233
        %v1250 = vadd.f32 %v1246, %v1234
        %v1251 = vsel %vm432, %v1247, 0.0
        %v1252 = vsel %vm432, %v1248, 0.0
        %v1253 = vadd.f32 %v1251, %v1252
        %v1254 = vsel %vm432, %v1249, 0.0
        %v1255 = vadd.f32 %v1253, %v1254
        %v1256 = vsel %vm432, %v1250, 0.0
        %v1257 = vadd.f32 %v1255, %v1256
        %1258 = vadd.xlane.f32.xlu0 %v1257
        %v1259 = vpop.xlane.xlu0 %1258
        %v1260 = vrot.slane %v1259, 4
        %v1261 = vadd.f32 %v1259, %v1260
        %v1262 = vrot.slane %v1261, 2
        %v1263 = vadd.f32 %v1261, %v1262
        %v1264 = vrot.slane %v1263, 1
        %v1265 = vadd.f32 %v1263, %v1264
        %s1266 = vtos %v1265
        %v1267 = vmul.f32 %v1215, %v505
        %v1268 = vmul.f32 %v1216, %v506
        %v1269 = vmul.f32 %v1217, %v507
        %v1270 = vmul.f32 %v1218, %v508
        %v1271 = vsel %vm432, %v1267, 0.0
        %v1272 = vsel %vm432, %v1268, 0.0
        %v1273 = vadd.f32 %v1271, %v1272
        %v1274 = vsel %vm432, %v1269, 0.0
        %v1275 = vadd.f32 %v1273, %v1274
        %v1276 = vsel %vm432, %v1270, 0.0
        %v1277 = vadd.f32 %v1275, %v1276
        %1278 = vadd.xlane.f32.xlu0 %v1277
        %v1279 = vpop.xlane.xlu0 %1278
        %v1280 = vrot.slane %v1279, 4
        %v1281 = vadd.f32 %v1279, %v1280
        %v1282 = vrot.slane %v1281, 2
        %v1283 = vadd.f32 %v1281, %v1282
        %v1284 = vrot.slane %v1283, 1
        %v1285 = vadd.f32 %v1283, %v1284
        %s1286 = vtos %v1285
        %v1287 = vmul.f32 %v1215, %v501
        %v1288 = vmul.f32 %v1216, %v502
        %v1289 = vmul.f32 %v1217, %v503
        %v1290 = vmul.f32 %v1218, %v504
        %v1291 = vsel %vm432, %v1287, 0.0
        %v1292 = vsel %vm432, %v1288, 0.0
        %v1293 = vadd.f32 %v1291, %v1292
        %v1294 = vsel %vm432, %v1289, 0.0
        %v1295 = vadd.f32 %v1293, %v1294
        %v1296 = vsel %vm432, %v1290, 0.0
        %v1297 = vadd.f32 %v1295, %v1296
        %1298 = vadd.xlane.f32.xlu0 %v1297
        %v1299 = vpop.xlane.xlu0 %1298
        %v1300 = vrot.slane %v1299, 4
        %v1301 = vadd.f32 %v1299, %v1300
        %v1302 = vrot.slane %v1301, 2
        %v1303 = vadd.f32 %v1301, %v1302
        %v1304 = vrot.slane %v1303, 1
        %v1305 = vadd.f32 %v1303, %v1304
        %s1306 = vtos %v1305
        %v1307 = vstv %s1306
        %v1308 = vadd.f32 %v1307, %v525
        %vm1309 = vcmp.eq.s32.totalorder %v397, 3
        %vm1310 = vmand %vm1309, %vm713
        %v1311 = vstv %s1266
        %v1312 = vsel %vm1310, %v1311, 0.0
        %v1313 = vadd.f32 %v1122, %v1312
        %vm1314 = vmand %vm1309, %vm718
        %v1315 = vstv %s1286
        %v1316 = vsel %vm1314, %v1315, 0.0
        %v1317 = vadd.f32 %v1313, %v1316
        %vm1318 = vmand %vm1309, %vm723
        %v1319 = vsel %vm1318, %v1308, 0.0
        %v1320 = vadd.f32 %v1317, %v1319
        %1321 = vst [vmem:[%s392] sm:$0xff] %v1320
        %p1322 = scmp.lt.s32.totalorder %s23, 1
        %s1323 = scalar_select %p1322, %s23, 1
        %s1324 = smul.addr %s1323, 8
        %s1325 = scalar_lea.vmem %s6, %s1324
        // Predicated region
        $region57: #{_tsa_forward.1} parent=43 // pred_check
          %p1326 = pneg %p192
        $region58: #{_tsa_forward.1} parent=43 // pred_check_branch
          %1328 = sbr.rel (%p1326) target = $region60
        $region59: #{_tsa_forward.1} parent=43 // pred_region
          _
        $region60: #{_tsa_forward.1} parent=43 // pred_fallthru
          _
      $region44: #{_tsa_forward.1} parent=5 // pred_fallthru
        _
      %p1329 = scmp.le.s32.totalorder 2, %s18
      // Predicated region
      $region61: #{_tsa_forward.1} parent=5 // pred_check
        %p1330 = pneg %p1329
      $region62: #{_tsa_forward.1} parent=5 // pred_check_branch
        %1332 = sbr.rel (%p1330) target = $region64
      $region63: #{_tsa_forward.1} parent=5 // pred_region
        %s1333 = ssub.s32 %s18, 2
        // Predicated region
        $region65: #{_tsa_forward.1} parent=63 // pred_check
          %p1334 = pneg %p198
        $region66: #{_tsa_forward.1} parent=63 // pred_check_branch
          %1336 = sbr.rel (%p1334) target = $region68
        $region67: #{_tsa_forward.1} parent=63 // pred_region
          %p1337 = scmp.lt.s32.totalorder %s24, 1
          %s1338 = scalar_select %p1337, %s24, 1
          %s1339 = smul.addr %s1338, 8
          %s1340 = scalar_lea.vmem %s6, %s1339
        $region68: #{_tsa_forward.1} parent=63 // pred_fallthru
          _
      $region64: #{_tsa_forward.1} parent=5 // pred_fallthru
        _
    $region6: #{_tsa_forward.1} parent=1 // loop_footer
      %s22 = sadd.s32 1, %s18
    $region7: #{_tsa_forward.1} parent=1 // loop_footer_branch
      %17 = sbr.rel target = $region3
    $region8: #{_tsa_forward.1} parent=1 // loop_exit
      _
    %1341 = vsyncpa [#allocation3], 1
    %s1342 = scalar_lea.sflag [#allocation3], 1
    %1343 = vsyncpa %s1342, 1
    %1344 = vsyncpa [#allocation5], 1
    %s1345 = scalar_lea.sflag [#allocation5], 1
    %1346 = vsyncpa %s1345, 1

</llo_original>
